<compile_context>
chip_gen: v5e
topology: v5e:2x2
jax: 0.10.0
libtpu: 0.0.40
codegen_flags: <defaults>
</compile_context>

<pallas_src>
import functools

import jax
import jax.numpy as jnp
from jax import lax
from jax.experimental import pallas as pl
from jax.experimental.pallas import tpu as pltpu

_SQRT_HALF = 0.7071067811865476


# --------------------------------------------------------------------------- kernel
def _residual_kernel(x_ref, w_ref, b_ref, o_ref):
    """o = gelu_exact(x @ w + b) + x   on one (tile_m, C) tile."""
    x = x_ref[...]
    # bf16 inputs (recommended): single full-rate bf16 MXU pass, f32 accumulation.
    # f32 inputs: force full-precision MXU passes for PyTorch-f32 parity.
    prec = lax.Precision.HIGHEST if x_ref.dtype == jnp.float32 else None
    y = jnp.dot(x, w_ref[...], preferred_element_type=jnp.float32, precision=prec)
    y = y + b_ref[...].astype(jnp.float32)
    # Exact erf GELU (matches PyTorch nn.GELU() default).
    y = 0.5 * y * (1.0 + lax.erf(y * _SQRT_HALF))
    # Residual add in f32; downcast only on the final store.
    o_ref[...] = (y + x.astype(jnp.float32)).astype(o_ref.dtype)


# ------------------------------------------------------------------ tiling helpers
def _round_up(x, n):
    return ((x + n - 1) // n) * n


@functools.lru_cache(maxsize=None)
def _vmem_capacity_bytes():
    """Physical VMEM of the attached TPU; conservative 64 MiB (v7x) fallback."""
    try:
        return int(pltpu.get_tpu_info().vmem_capacity_bytes)
    except Exception:
        return 64 * 1024 * 1024


def _sublane_granule(itemsize):
    # Second-minor block-dim multiple: f32 -> 8, bf16 -> 16, int8/fp8 -> 32.
    return max(8, 32 // itemsize)


def _pick_tile_m(m, c, x_itemsize, w_itemsize, tile_m):
    """Largest tile_m <= requested that fits the generation-aware VMEM budget,
    rounded to the dtype sublane granule, capped so the grid has >= 2 blocks."""
    granule = _sublane_granule(x_itemsize)
    budget = _vmem_capacity_bytes() // 2      # ~32 MiB on v7x, ~64 MiB on v5e/v6e
    # >= 2 roughly balanced blocks so dimension_semantics=("parallel",) can shard
    # the M axis across v7x's two TensorCores.
    tile_m = min(tile_m, _round_up(pl.cdiv(m, 2), granule))
    tile_m = max(granule, (tile_m // granule) * granule)
    weight_bytes = (c * c + c) * w_itemsize   # resident weights, single-buffered
    # x tile + out tile, each double-buffered by the BlockSpec pipeline.
    while tile_m > granule and 4 * tile_m * c * x_itemsize + weight_bytes > budget:
        tile_m = max(granule, _round_up(tile_m // 2, granule))
    return tile_m


def _resident_spec(block_shape):
    """BlockSpec for a grid-invariant operand; single-buffered where supported."""
    index_map = lambda i: (0, 0)
    if hasattr(pl, "Buffered"):
        try:
            return pl.BlockSpec(block_shape, index_map,
                                pipeline_mode=pl.Buffered(1))
        except TypeError:
            pass
    return pl.BlockSpec(block_shape, index_map)


# --------------------------------------------------------------------- pallas_call
def _residual_matmul(x_mat, w, b, *, tile_m, donate_x):
    """Fast path: channels-last (M, C) activations, no padding, no extra passes."""
    m, c = x_mat.shape
    tile_m = _pick_tile_m(m, c, x_mat.dtype.itemsize, w.dtype.itemsize, tile_m)
    grid_m = pl.cdiv(m, tile_m)               # ragged last block masked by Pallas
    b2d = b.reshape(1, c)

    act_bytes = x_mat.dtype.itemsize
    cost = pl.CostEstimate(
        flops=2 * m * c * c,
        transcendentals=m * c,
        bytes_accessed=2 * m * c * act_bytes + (c * c + c) * w.dtype.itemsize,
    )

    return pl.pallas_call(
        _residual_kernel,
        out_shape=jax.ShapeDtypeStruct((m, c), x_mat.dtype),
        grid_spec=pltpu.PrefetchScalarGridSpec(
            num_scalar_prefetch=0,
            grid=(grid_m,),
            in_specs=[
                pl.BlockSpec((tile_m, c), lambda i: (i, 0)),  # x tile (residual)
                _resident_spec((c, c)),                       # weight, resident
                _resident_spec((1, c)),                       # bias, resident
            ],
            out_specs=pl.BlockSpec((tile_m, c), lambda i: (i, 0)),
        ),
        compiler_params=pltpu.CompilerParams(
            dimension_semantics=("parallel",),                # shard M across TCs
            vmem_limit_bytes=(3 * _vmem_capacity_bytes()) // 4,
        ),
        cost_estimate=cost,
        # Only alias when the caller actually donates the activation buffer;
        # otherwise XLA inserts a defensive copy.
        input_output_aliases=({0: 0} if donate_x else {}),
    )(x_mat, w, b2d)


@functools.partial(jax.jit, static_argnames=("tile_m", "donate_x"))
def residual_forward_nhwc(x_nhwc, w, b, *, tile_m=1024, donate_x=False):
    """Residual(pointwise_conv -> GELU)(x) for channels-last input (fast path)."""
    n, h, wd, c = x_nhwc.shape
    w = w.astype(x_nhwc.dtype)
    b = b.astype(x_nhwc.dtype)
    out = _residual_matmul(x_nhwc.reshape(n * h * wd, c), w, b,
                           tile_m=tile_m, donate_x=donate_x)
    return out.reshape(n, h, wd, c)


@functools.partial(jax.jit, static_argnames=("tile_m",))
def residual_forward_nchw(x_nchw, w, b, *, tile_m=1024):
    """PyTorch-convention NCHW adapter: layout glue only.

    Each transpose is a full HBM read+write of the activation (more traffic than
    the fused kernel itself) — keep the pipeline channels-last end-to-end and call
    residual_forward_nhwc directly whenever possible.
    """
    # TODO(synk): for an NCHW-only pipeline, fold the layout change into the kernel
    # (grid over (N, H*W) tiles with an index_map / DMA gather into the NCHW array)
    # instead of materializing the transpose.
    x_nhwc = jnp.transpose(x_nchw, (0, 2, 3, 1))
    out = residual_forward_nhwc(x_nhwc, w, b, tile_m=tile_m)
    return jnp.transpose(out, (0, 3, 1, 2))


# ----------------------------------------------------------------------- reference
def _reference_nhwc(x_nhwc, w, b):
    x = x_nhwc.astype(jnp.float32)
    y = x @ w.astype(jnp.float32) + b.astype(jnp.float32)
    y = 0.5 * y * (1.0 + lax.erf(y * _SQRT_HALF))   # exact GELU (PyTorch default)
    return (y + x).astype(x_nhwc.dtype)


if __name__ == "__main__":
    # Small ConvMixer-like shapes: batch=2, channels=128 (lane-dense), spatial=14.
    # M = N*H*W = 392 is deliberately NOT a multiple of the tile, exercising the
    # ragged-last-block path (no padding pass) and the >=2-block megacore cap.
    N, H, W, C = 2, 14, 14, 128
    key = jax.random.PRNGKey(0)
    kx, kw, kb = jax.random.split(key, 3)

    # bf16 I/O with f32 accumulation: recommended production dtype (HBM-bound kernel).
    x = jax.random.normal(kx, (N, H, W, C), dtype=jnp.float32).astype(jnp.bfloat16)
    w = (jax.random.normal(kw, (C, C), dtype=jnp.float32)
         * (1.0 / jnp.sqrt(C))).astype(jnp.bfloat16)
    b = (jax.random.normal(kb, (C,), dtype=jnp.float32) * 0.01).astype(jnp.bfloat16)

    out = residual_forward_nhwc(x, w, b, tile_m=256)   # -> 2 grid steps (208 + 184)
    jax.block_until_ready(out)

    ref = _reference_nhwc(x, w, b)
    assert out.shape == x.shape and out.dtype == x.dtype
    err = float(jnp.max(jnp.abs(out.astype(jnp.float32) - ref.astype(jnp.float32))))
    assert jnp.allclose(out.astype(jnp.float32), ref.astype(jnp.float32),
                        atol=5e-2, rtol=5e-2), err

    # NCHW adapter (PyTorch convention) wraps the same kernel.
    x_nchw = jnp.transpose(x, (0, 3, 1, 2))
    out_nchw = residual_forward_nchw(x_nchw, w, b, tile_m=256)
    jax.block_until_ready(out_nchw)
    ref_nchw = jnp.transpose(ref, (0, 3, 1, 2))
    assert jnp.allclose(out_nchw.astype(jnp.float32), ref_nchw.astype(jnp.float32),
                        atol=5e-2, rtol=5e-2)

    print("KERNEL_OK")
</pallas_src>

<mosaic_0001>
module attributes {stable_mosaic.version = 11 : i64} {
  func.func @_residual_kernel(%arg0: i32, %arg1: memref<208x128xbf16, #tpu.memory_space<vmem>>, %arg2: memref<128x128xbf16, #tpu.memory_space<vmem>>, %arg3: memref<1x128xbf16, #tpu.memory_space<vmem>>, %arg4: memref<208x128xbf16, #tpu.memory_space<vmem>>) attributes {dimension_semantics = [#tpu.dimension_semantics<parallel>], iteration_bounds = array<i64: 2>, scalar_prefetch = 0 : i64, scratch_operands = 0 : i64, tpu.core_type = #tpu.core_type<tc>, window_params = [{transform_indices = @transform_0, window_bounds = array<i64: 208, 128>}, {pipeline_mode = #tpu.pipeline_mode<synchronous>, transform_indices = @transform_1, window_bounds = array<i64: 128, 128>}, {pipeline_mode = #tpu.pipeline_mode<synchronous>, transform_indices = @transform_2, window_bounds = array<i64: 1, 128>}, {transform_indices = @transform_3, window_bounds = array<i64: 208, 128>}]} {
    %c0 = arith.constant 0 : index
    %c0_0 = arith.constant 0 : index
    %0 = vector.load %arg1[%c0, %c0_0] : memref<208x128xbf16, #tpu.memory_space<vmem>>, vector<208x128xbf16>
    %c0_1 = arith.constant 0 : index
    %c0_2 = arith.constant 0 : index
    %1 = vector.load %arg2[%c0_1, %c0_2] : memref<128x128xbf16, #tpu.memory_space<vmem>>, vector<128x128xbf16>
    %cst = arith.constant dense<0.000000e+00> : vector<208x128xf32>
    %2 = tpu.matmul %0, %1, %cst {dimension_numbers = #tpu.dot_dimension_numbers<[1], [0], [0], [1], [0, 0, 1, 1], [], []>} : vector<208x128xbf16>, vector<128x128xbf16>, vector<208x128xf32> -> vector<208x128xf32>
    %c0_3 = arith.constant 0 : index
    %c0_4 = arith.constant 0 : index
    %3 = vector.load %arg3[%c0_3, %c0_4] : memref<1x128xbf16, #tpu.memory_space<vmem>>, vector<1x128xbf16>
    %4 = arith.extf %3 : vector<1x128xbf16> to vector<1x128xf32>
    %5 = vector.broadcast %4 : vector<1x128xf32> to vector<208x128xf32>
    %6 = arith.addf %2, %5 : vector<208x128xf32>
    %cst_5 = arith.constant 5.000000e-01 : f32
    %7 = vector.broadcast %cst_5 : f32 to vector<208x128xf32>
    %8 = arith.mulf %7, %6 : vector<208x128xf32>
    %cst_6 = arith.constant 0.707106769 : f32
    %9 = vector.broadcast %cst_6 : f32 to vector<208x128xf32>
    %10 = arith.mulf %6, %9 : vector<208x128xf32>
    %11 = math.erf %10 : vector<208x128xf32>
    %cst_7 = arith.constant 1.000000e+00 : f32
    %12 = vector.broadcast %cst_7 : f32 to vector<208x128xf32>
    %13 = arith.addf %12, %11 : vector<208x128xf32>
    %14 = arith.mulf %8, %13 : vector<208x128xf32>
    %15 = arith.extf %0 : vector<208x128xbf16> to vector<208x128xf32>
    %16 = arith.addf %14, %15 : vector<208x128xf32>
    %17 = arith.truncf %16 : vector<208x128xf32> to vector<208x128xbf16>
    %c0_8 = arith.constant 0 : index
    %c0_9 = arith.constant 0 : index
    %18 = vector.load %arg4[%c0_8, %c0_9] : memref<208x128xbf16, #tpu.memory_space<vmem>>, vector<208x128xbf16>
    tpu.vector_store %arg4[%c0_8, %c0_9], %17 {strides = array<i32>} : memref<208x128xbf16, #tpu.memory_space<vmem>>, vector<208x128xbf16>,
    return
  }
  func.func @transform_0(%arg0: i32) -> (i32, i32) {
    %c0_i32 = arith.constant 0 : i32
    %c0_i32_0 = arith.constant 0 : i32
    return %arg0, %c0_i32 : i32, i32
  }
  func.func @transform_1(%arg0: i32) -> (i32, i32) {
    %c0_i32 = arith.constant 0 : i32
    %c0_i32_0 = arith.constant 0 : i32
    %c0_i32_1 = arith.constant 0 : i32
    return %c0_i32, %c0_i32_0 : i32, i32
  }
  func.func @transform_2(%arg0: i32) -> (i32, i32) {
    %c0_i32 = arith.constant 0 : i32
    %c0_i32_0 = arith.constant 0 : i32
    %c0_i32_1 = arith.constant 0 : i32
    return %c0_i32, %c0_i32_0 : i32, i32
  }
  func.func @transform_3(%arg0: i32) -> (i32, i32) {
    %c0_i32 = arith.constant 0 : i32
    %c0_i32_0 = arith.constant 0 : i32
    return %arg0, %c0_i32 : i32, i32
  }
}

</mosaic_0001>

<llo_original>
// kernel: residual_forward_nhwc.1
$region0: #{residual_forward_nhwc.1}
  #allocation0 [shape = 'u32[]', space=smem, size = 0x4, offset = 0x4, fixed_abs, tag = 'smem constant byte address 0x4 - core index']
  #allocation1 [shape = 'u32[72,128]{1,0:T(1,128)}', space=vmem, size = 0x9000, scoped, tag = 'internal scratch']
  %s0 = inlined_call_operand.vmem [shape: bf16[392,128], index: 0, kind: input, shape index: {}]
  %s1 = inlined_call_operand.vmem [shape: bf16[128,128], index: 1, kind: input, shape index: {}]
  %s2 = inlined_call_operand.vmem [shape: bf16[1,128], index: 2, kind: input, shape index: {}]
  %s3 = inlined_call_operand.vmem [shape: bf16[392,128], index: 3, kind: output, shape index: {}]
  %s4 = sld [smem:[#allocation0]]
  $region89: #{residual_forward_nhwc.1} parent=0
    _
  %s6 = ssub.s32 1, %s4
  %s7 = scalar_select 0, %s6, %s4
  $region1: #{residual_forward_nhwc.1} parent=0
    #allocation2 [shape = 'u8[106496]{0}', space=vmem, size = 0x1a000, scoped, tag = 'output window, operand 0']
    loop: start=0, step=1, limit=4
    $region2: #{residual_forward_nhwc.1} parent=1 // loop_pre_header
      _
    $region3: #{residual_forward_nhwc.1} parent=1 // loop_header
      %s9 = sphi 0, %s13
      %p10 = scmp.ge.s32.totalorder %s9, 4
      %s19 = sphi 0, %s21
      %s22 = sphi 0, %s19
      %s23 = sphi 0, %s22
      %s39 = sphi 0, %s23
      %s43 = sphi 0, %s43
      %s45 = sphi 0, %s43
      %s46 = sphi 0, %s45
      %s60 = sphi 0, %s46
      %s64 = sphi 0, %s64
      %s66 = sphi 0, %s64
      %s67 = sphi 0, %s66
      %s81 = sphi 0, %s67
      %s87 = sphi 0, %s89
      %s90 = sphi 0, %s87
      %s91 = sphi 0, %s90
      %s107 = sphi 0, %s91
    $region4: #{residual_forward_nhwc.1} parent=1 // loop_header_branch
      %12 = sbr.rel (%p10) target = $region8
    $region5: #{residual_forward_nhwc.1} parent=1 // loop_body
      %s14 = ssub.s32 %s9, 1
      %s15 = ssub.s32 %s9, 2
      %s16 = sadd.s32 %s9, 1
      %s17 = ssub.s32 %s9, %s16
      %p18 = scmp.eq.s32.totalorder %s17, 0
      %s20 = sadd.s32 %s19, 1
      %s21 = scalar_select %p18, %s19, %s20
      %p24 = pneg %p18
      %p25 = scmp.eq.s32.totalorder %s9, 1
      %p26 = por %p24, %p25
      %p27 = scmp.ne.s32.totalorder %s19, %s22
      %p28 = scmp.eq.s32.totalorder %s9, 0
      %p29 = por %p27, %p28
      %p30 = scmp.ne.s32.totalorder %s19, %s22
      %p31 = scmp.eq.s32.totalorder %s14, 1
      %p32 = por %p30, %p31
      %p33 = scmp.ne.s32.totalorder %s22, %s23
      %p34 = scmp.eq.s32.totalorder %s14, 0
      %p35 = por %p33, %p34
      %p36 = scmp.ne.s32.totalorder %s22, %s23
      %p37 = scmp.eq.s32.totalorder %s15, 1
      %p38 = por %p36, %p37
      %p40 = scmp.ne.s32.totalorder %s23, %s39
      %p41 = scmp.eq.s32.totalorder %s15, 0
      %p42 = por %p40, %p41
      %s44 = sadd.s32 %s43, 1
      %p47 = scmp.eq.s32.totalorder %s9, 1
      %p48 = scmp.ne.s32.totalorder %s43, %s45
      %p49 = scmp.eq.s32.totalorder %s9, 0
      %p50 = por %p48, %p49
      %p51 = scmp.ne.s32.totalorder %s43, %s45
      %p52 = scmp.eq.s32.totalorder %s14, 1
      %p53 = por %p51, %p52
      %p54 = scmp.ne.s32.totalorder %s45, %s46
      %p55 = scmp.eq.s32.totalorder %s14, 0
      %p56 = por %p54, %p55
      %p57 = scmp.ne.s32.totalorder %s45, %s46
      %p58 = scmp.eq.s32.totalorder %s15, 1
      %p59 = por %p57, %p58
      %p61 = scmp.ne.s32.totalorder %s46, %s60
      %p62 = scmp.eq.s32.totalorder %s15, 0
      %p63 = por %p61, %p62
      %s65 = sadd.s32 %s64, 1
      %p68 = scmp.eq.s32.totalorder %s9, 1
      %p69 = scmp.ne.s32.totalorder %s64, %s66
      %p70 = scmp.eq.s32.totalorder %s9, 0
      %p71 = por %p69, %p70
      %p72 = scmp.ne.s32.totalorder %s64, %s66
      %p73 = scmp.eq.s32.totalorder %s14, 1
      %p74 = por %p72, %p73
      %p75 = scmp.ne.s32.totalorder %s66, %s67
      %p76 = scmp.eq.s32.totalorder %s14, 0
      %p77 = por %p75, %p76
      %p78 = scmp.ne.s32.totalorder %s66, %s67
      %p79 = scmp.eq.s32.totalorder %s15, 1
      %p80 = por %p78, %p79
      %p82 = scmp.ne.s32.totalorder %s67, %s81
      %p83 = scmp.eq.s32.totalorder %s15, 0
      %p84 = por %p82, %p83
      %s85 = ssub.s32 %s9, %s16
      %p86 = scmp.eq.s32.totalorder %s85, 0
      %s88 = sadd.s32 %s87, 1
      %s89 = scalar_select %p86, %s87, %s88
      %p92 = pneg %p86
      %p93 = scmp.eq.s32.totalorder %s9, 1
      %p94 = por %p92, %p93
      %p95 = scmp.ne.s32.totalorder %s87, %s90
      %p96 = scmp.eq.s32.totalorder %s9, 0
      %p97 = por %p95, %p96
      %p98 = scmp.ne.s32.totalorder %s87, %s90
      %p99 = scmp.eq.s32.totalorder %s14, 1
      %p100 = por %p98, %p99
      %p101 = scmp.ne.s32.totalorder %s90, %s91
      %p102 = scmp.eq.s32.totalorder %s14, 0
      %p103 = por %p101, %p102
      %p104 = scmp.ne.s32.totalorder %s90, %s91
      %p105 = scmp.eq.s32.totalorder %s15, 1
      %p106 = por %p104, %p105
      %p108 = scmp.ne.s32.totalorder %s91, %s107
      %p109 = scmp.eq.s32.totalorder %s15, 0
      %p110 = por %p108, %p109
      %p111 = scmp.le.s32.totalorder 1, %s9
      %p112 = scmp.lt.s32.totalorder %s9, 3
      %p113 = pnand %p111, %p112
      %p114 = pneg %p113
      // Predicated region
      $region9: #{residual_forward_nhwc.1} parent=5 // pred_check
        _
      $region10: #{residual_forward_nhwc.1} parent=5 // pred_check_branch
        %116 = sbr.rel (%p113) target = $region12
      $region11: #{residual_forward_nhwc.1} parent=5 // pred_region
        %s117 = ssub.s32 %s9, 1
        // Predicated region
        $region13: #{residual_forward_nhwc.1} parent=11 // pred_check
          %p118 = pneg %p56
        $region14: #{residual_forward_nhwc.1} parent=11 // pred_check_branch
          %120 = sbr.rel (%p118) target = $region16
        $region15: #{residual_forward_nhwc.1} parent=11 // pred_region
          _
        $region16: #{residual_forward_nhwc.1} parent=11 // pred_fallthru
          _
        // Predicated region
        $region17: #{residual_forward_nhwc.1} parent=11 // pred_check
          %p121 = pneg %p77
        $region18: #{residual_forward_nhwc.1} parent=11 // pred_check_branch
          %123 = sbr.rel (%p121) target = $region20
        $region19: #{residual_forward_nhwc.1} parent=11 // pred_region
          _
        $region20: #{residual_forward_nhwc.1} parent=11 // pred_fallthru
          _
      $region12: #{residual_forward_nhwc.1} parent=5 // pred_fallthru
        _
      %p124 = scmp.lt.s32.totalorder %s9, 2
      // Predicated region
      $region21: #{residual_forward_nhwc.1} parent=5 // pred_check
        %p125 = pneg %p124
      $region22: #{residual_forward_nhwc.1} parent=5 // pred_check_branch
        %127 = sbr.rel (%p125) target = $region24
      $region23: #{residual_forward_nhwc.1} parent=5 // pred_region
        // Predicated region
        $region25: #{residual_forward_nhwc.1} parent=23 // pred_check
          %p128 = pneg %p29
        $region26: #{residual_forward_nhwc.1} parent=23 // pred_check_branch
          %130 = sbr.rel (%p128) target = $region28
        $region27: #{residual_forward_nhwc.1} parent=23 // pred_region
          %s131 = smul.u32 26, %s9
          %s132 = ssub.s32 49, %s131
          %p133 = scmp.lt.s32.totalorder %s132, 26
          %s134 = scalar_select %p133, %s132, 26
          %s135 = smul.u32 4, %s134
          %p136 = scmp.lt.s32.totalorder %s131, 48
          %s137 = scalar_select %p136, %s131, 48
          %s138 = smul.addr %s137, 4
          %s139 = scalar_lea.vmem %s0, %s138
          %s140 = smul.u32 26, %s9
          %s141 = ssub.s32 49, %s140
          %p142 = scmp.lt.s32.totalorder %s141, 26
          %s143 = scalar_select %p142, %s141, 26
          %s144 = smul.u32 4, %s143
        $region28: #{residual_forward_nhwc.1} parent=23 // pred_fallthru
          _
      $region24: #{residual_forward_nhwc.1} parent=5 // pred_fallthru
        _
      %p145 = scmp.le.s32.totalorder 1, %s9
      %p146 = scmp.lt.s32.totalorder %s9, 3
      %p147 = pnand %p145, %p146
      %p148 = pneg %p147
      // Predicated region
      $region29: #{residual_forward_nhwc.1} parent=5 // pred_check
        _
      $region30: #{residual_forward_nhwc.1} parent=5 // pred_check_branch
        %150 = sbr.rel (%p147) target = $region32
      $region31: #{residual_forward_nhwc.1} parent=5 // pred_region
        %s151 = ssub.s32 %s9, 1
        %s152 = smul.u32 26, %s14
        %s153 = ssub.s32 49, %s152
        %p154 = scmp.lt.s32.totalorder %s153, 26
        %s155 = scalar_select %p154, %s153, 26
        %s156 = smul.u32 4, %s155
        %p157 = scmp.lt.s32.totalorder %s152, 48
        %s158 = scalar_select %p157, %s152, 48
        %s159 = smul.addr %s158, 4
        %s160 = scalar_lea.vmem %s0, %s159
        %p161 = pneg %p35
        %p162 = pneg %p32
        %p163 = pneg %p56
        %p164 = pneg %p53
        %p165 = pneg %p77
        %p166 = pneg %p74
        %p167 = pneg %p103
        %p168 = pneg %p100
        %s169 = sand.u32 %s90, 1
        %s170 = sand.u32 %s90, 1
        %s171 = smul.addr %s170, 104
        %s172 = scalar_lea.vmem [#allocation2], %s171
        %s173 = smul.u32 26, %s14
        %s174 = ssub.s32 49, %s173
        %p175 = scmp.lt.s32.totalorder %s174, 26
        %s176 = scalar_select %p175, %s174, 26
        %s177 = smul.u32 4, %s176
        %p178 = scmp.lt.s32.totalorder %s173, 48
        %s179 = scalar_select %p178, %s173, 48
        %s180 = smul.addr %s179, 4
        %s181 = scalar_lea.vmem %s0, %s180
        %s182 = smul.u32 26, %s14
        %s183 = ssub.s32 49, %s182
        %p184 = scmp.lt.s32.totalorder %s183, 26
        %s185 = scalar_select %p184, %s183, 26
        %s186 = smul.u32 4, %s185
        %s187 = smul.u32 26, %s14
        %s188 = ssub.s32 49, %s187
        %p189 = scmp.lt.s32.totalorder %s188, 26
        %s190 = scalar_select %p189, %s188, 26
        %s191 = smul.u32 4, %s190
        %v192 = vld [vmem:[%s181] sm:$0xf]
        %v193 = vld [vmem:[%s181 + $0x4] sm:$0xf]
        %v194 = vld [vmem:[%s181 + $0x8] sm:$0xf]
        %v195 = vld [vmem:[%s181 + $0xc] sm:$0xf]
        %v196 = vld [vmem:[%s181 + $0x10] sm:$0xf]
        %v197 = vld [vmem:[%s181 + $0x14] sm:$0xf]
        %v198 = vld [vmem:[%s181 + $0x18] sm:$0xf]
        %v199 = vld [vmem:[%s181 + $0x1c] sm:$0xf]
        %v200 = vld [vmem:[%s181 + $0x20] sm:$0xf]
        %v201 = vld [vmem:[%s181 + $0x24] sm:$0xf]
        %v202 = vld [vmem:[%s181 + $0x28] sm:$0xf]
        %v203 = vld [vmem:[%s181 + $0x2c] sm:$0xf]
        %v204 = vld [vmem:[%s181 + $0x30] sm:$0xf]
        %v205 = vld [vmem:[%s181 + $0x34] sm:$0xf]
        %v206 = vld [vmem:[%s181 + $0x38] sm:$0xf]
        %v207 = vld [vmem:[%s181 + $0x3c] sm:$0xf]
        %v208 = vld [vmem:[%s181 + $0x40] sm:$0xf]
        %v209 = vld [vmem:[%s181 + $0x44] sm:$0xf]
        %v210 = vld [vmem:[%s181 + $0x48] sm:$0xf]
        %v211 = vld [vmem:[%s181 + $0x4c] sm:$0xf]
        %v212 = vld [vmem:[%s181 + $0x50] sm:$0xf]
        %v213 = vld [vmem:[%s181 + $0x54] sm:$0xf]
        %v214 = vld [vmem:[%s181 + $0x58] sm:$0xf]
        %v215 = vld [vmem:[%s181 + $0x5c] sm:$0xf]
        %v216 = vld [vmem:[%s181 + $0x60] sm:$0xf]
        %v217 = vld [vmem:[%s181 + $0x64] sm:$0xf]
        %v218 = vld [vmem:[%s1] sm:$0xf]
        %v219 = vld [vmem:[%s1 + $0x4] sm:$0xf]
        %v220 = vld [vmem:[%s1 + $0x8] sm:$0xf]
        %v221 = vld [vmem:[%s1 + $0xc] sm:$0xf]
        %v222 = vld [vmem:[%s1 + $0x10] sm:$0xf]
        %v223 = vld [vmem:[%s1 + $0x14] sm:$0xf]
        %v224 = vld [vmem:[%s1 + $0x18] sm:$0xf]
        %v225 = vld [vmem:[%s1 + $0x1c] sm:$0xf]
        %v226 = vld [vmem:[%s1 + $0x20] sm:$0xf]
        %v227 = vld [vmem:[%s1 + $0x24] sm:$0xf]
        %v228 = vld [vmem:[%s1 + $0x28] sm:$0xf]
        %v229 = vld [vmem:[%s1 + $0x2c] sm:$0xf]
        %v230 = vld [vmem:[%s1 + $0x30] sm:$0xf]
        %v231 = vld [vmem:[%s1 + $0x34] sm:$0xf]
        %v232 = vld [vmem:[%s1 + $0x38] sm:$0xf]
        %v233 = vld [vmem:[%s1 + $0x3c] sm:$0xf]
        %v234 = vld [vmem:[%s2] sm:$0x1]
        %v235 = vunpack.c.l.bf16 %v234
        %v236 = vperm.slane %v235, 0
        %v263 = vunpack.c.l.b16 %v192
        %v264 = vunpack.c.l.b16 %v193
        %v265 = vunpack.c.l.b16 %v194
        %v266 = vunpack.c.l.b16 %v195
        %v267 = vunpack.c.l.b16 %v196
        %v268 = vunpack.c.l.b16 %v197
        %v269 = vunpack.c.l.b16 %v198
        %v270 = vunpack.c.l.b16 %v199
        %v271 = vunpack.c.l.b16 %v200
        %v272 = vunpack.c.l.b16 %v201
        %v273 = vunpack.c.l.b16 %v202
        %v274 = vunpack.c.l.b16 %v203
        %v275 = vunpack.c.l.b16 %v204
        %v276 = vunpack.c.l.b16 %v205
        %v277 = vunpack.c.l.b16 %v206
        %v278 = vunpack.c.l.b16 %v207
        %v279 = vunpack.c.l.b16 %v208
        %v280 = vunpack.c.l.b16 %v209
        %v281 = vunpack.c.l.b16 %v210
        %v282 = vunpack.c.l.b16 %v211
        %v283 = vunpack.c.l.b16 %v212
        %v284 = vunpack.c.l.b16 %v213
        %v285 = vunpack.c.l.b16 %v214
        %v286 = vunpack.c.l.b16 %v215
        %v287 = vunpack.c.l.b16 %v216
        %v288 = vunpack.c.l.b16 %v217
        %v289 = vpack.c.b16 %v264, %v263
        %v290 = vpack.c.b16 %v266, %v265
        %v291 = vpack.c.b16 %v268, %v267
        %v292 = vpack.c.b16 %v270, %v269
        %v293 = vpack.c.b16 %v272, %v271
        %v294 = vpack.c.b16 %v274, %v273
        %v295 = vpack.c.b16 %v276, %v275
        %v296 = vpack.c.b16 %v278, %v277
        %v297 = vpack.c.b16 %v280, %v279
        %v298 = vpack.c.b16 %v282, %v281
        %v299 = vpack.c.b16 %v284, %v283
        %v300 = vpack.c.b16 %v286, %v285
        %v301 = vpack.c.b16 %v288, %v287
        %v331 = vunpack.c.l.b16 %v218
        %v332 = vunpack.c.l.b16 %v219
        %v333 = vunpack.c.l.b16 %v220
        %v334 = vunpack.c.l.b16 %v221
        %v335 = vunpack.c.l.b16 %v222
        %v336 = vunpack.c.l.b16 %v223
        %v337 = vunpack.c.l.b16 %v224
        %v338 = vunpack.c.l.b16 %v225
        %v339 = vunpack.c.l.b16 %v226
        %v340 = vunpack.c.l.b16 %v227
        %v341 = vunpack.c.l.b16 %v228
        %v342 = vunpack.c.l.b16 %v229
        %v343 = vunpack.c.l.b16 %v230
        %v344 = vunpack.c.l.b16 %v231
        %v345 = vunpack.c.l.b16 %v232
        %v346 = vunpack.c.l.b16 %v233
        %v347 = vpack.c.b16 %v332, %v331
        %v348 = vpack.c.b16 %v334, %v333
        %v349 = vpack.c.b16 %v336, %v335
        %v350 = vpack.c.b16 %v338, %v337
        %v351 = vpack.c.b16 %v340, %v339
        %v352 = vpack.c.b16 %v342, %v341
        %v353 = vpack.c.b16 %v344, %v343
        %v354 = vpack.c.b16 %v346, %v345
        %363 = vmatpush.bf16.msra.mxu0 %v354
        %364 = vmatpush.bf16.msra.mxu0 %v353
        %365 = vmatpush.bf16.msra.mxu0 %v352
        %366 = vmatpush.bf16.msra.mxu0 %v351
        %367 = vmatpush.bf16.msra.mxu0 %v350
        %368 = vmatpush.bf16.msra.mxu0 %v349
        %369 = vmatpush.bf16.msra.mxu0 %v348
        %370 = vmatpush.bf16.msra.mxu0 %v347
        %371 = vmatmul.bf16.gmra.mxu0 %v289
        %v372 = vpop.f32.mrf.mxu0
        %v373 = vadd.f32 %v236, %v372
        %v374 = vpop.f32.mrf.mxu0
        %v375 = vadd.f32 %v236, %v374
        %376 = vmatmul.bf16.gmra.mxu0 %v290
        %v377 = vpop.f32.mrf.mxu0
        %v378 = vadd.f32 %v236, %v377
        %v379 = vpop.f32.mrf.mxu0
        %v380 = vadd.f32 %v236, %v379
        %381 = vmatmul.bf16.gmra.mxu0 %v291
        %v382 = vpop.f32.mrf.mxu0
        %v383 = vadd.f32 %v236, %v382
        %v384 = vpop.f32.mrf.mxu0
        %v385 = vadd.f32 %v236, %v384
        %386 = vmatmul.bf16.gmra.mxu0 %v292
        %v387 = vpop.f32.mrf.mxu0
        %v388 = vadd.f32 %v236, %v387
        %v389 = vpop.f32.mrf.mxu0
        %v390 = vadd.f32 %v236, %v389
        %391 = vmatmul.bf16.gmra.mxu0 %v293
        %v392 = vpop.f32.mrf.mxu0
        %v393 = vadd.f32 %v236, %v392
        %v394 = vpop.f32.mrf.mxu0
        %v395 = vadd.f32 %v236, %v394
        %396 = vmatmul.bf16.gmra.mxu0 %v294
        %v397 = vpop.f32.mrf.mxu0
        %v398 = vadd.f32 %v236, %v397
        %v399 = vpop.f32.mrf.mxu0
        %v400 = vadd.f32 %v236, %v399
        %401 = vmatmul.bf16.gmra.mxu0 %v295
        %v402 = vpop.f32.mrf.mxu0
        %v403 = vadd.f32 %v236, %v402
        %v404 = vpop.f32.mrf.mxu0
        %v405 = vadd.f32 %v236, %v404
        %406 = vmatmul.bf16.gmra.mxu0 %v296
        %v407 = vpop.f32.mrf.mxu0
        %v408 = vadd.f32 %v236, %v407
        %v409 = vpop.f32.mrf.mxu0
        %v410 = vadd.f32 %v236, %v409
        %411 = vmatmul.bf16.gmra.mxu0 %v297
        %v412 = vpop.f32.mrf.mxu0
        %v413 = vadd.f32 %v236, %v412
        %v414 = vpop.f32.mrf.mxu0
        %v415 = vadd.f32 %v236, %v414
        %416 = vmatmul.bf16.gmra.mxu0 %v298
        %v417 = vpop.f32.mrf.mxu0
        %v418 = vadd.f32 %v236, %v417
        %v419 = vpop.f32.mrf.mxu0
        %v420 = vadd.f32 %v236, %v419
        %421 = vmatmul.bf16.gmra.mxu0 %v299
        %v422 = vpop.f32.mrf.mxu0
        %v423 = vadd.f32 %v236, %v422
        %v424 = vpop.f32.mrf.mxu0
        %v425 = vadd.f32 %v236, %v424
        %426 = vmatmul.bf16.gmra.mxu0 %v300
        %v427 = vpop.f32.mrf.mxu0
        %v428 = vadd.f32 %v236, %v427
        %v429 = vpop.f32.mrf.mxu0
        %v430 = vadd.f32 %v236, %v429
        %431 = vmatmul.bf16.gmra.mxu0 %v301
        %v432 = vpop.f32.mrf.mxu0
        %v433 = vadd.f32 %v236, %v432
        %v434 = vpop.f32.mrf.mxu0
        %v435 = vadd.f32 %v236, %v434
        %436 = vdwg.mxu0
        %v437 = vmul.f32 %v373, 0.5
        %v438 = vmul.f32 %v375, 0.5
        %v439 = vmul.f32 %v378, 0.5
        %v440 = vmul.f32 %v380, 0.5
        %v441 = vmul.f32 %v383, 0.5
        %v442 = vmul.f32 %v385, 0.5
        %v443 = vmul.f32 %v388, 0.5
        %v444 = vmul.f32 %v390, 0.5
        %v445 = vmul.f32 %v393, 0.5
        %v446 = vmul.f32 %v395, 0.5
        %v447 = vmul.f32 %v398, 0.5
        %v448 = vmul.f32 %v400, 0.5
        %v449 = vmul.f32 %v403, 0.5
        %v450 = vmul.f32 %v405, 0.5
        %v451 = vmul.f32 %v408, 0.5
        %v452 = vmul.f32 %v410, 0.5
        %v453 = vmul.f32 %v413, 0.5
        %v454 = vmul.f32 %v415, 0.5
        %v455 = vmul.f32 %v418, 0.5
        %v456 = vmul.f32 %v420, 0.5
        %v457 = vmul.f32 %v423, 0.5
        %v458 = vmul.f32 %v425, 0.5
        %v459 = vmul.f32 %v428, 0.5
        %v460 = vmul.f32 %v430, 0.5
        %v461 = vmul.f32 %v433, 0.5
        %v462 = vmul.f32 %v435, 0.5
        %v463 = vmul.f32 %v373, 0.70710677
        %v464 = vmul.f32 %v375, 0.70710677
        %v465 = vmul.f32 %v378, 0.70710677
        %v466 = vmul.f32 %v380, 0.70710677
        %v467 = vmul.f32 %v383, 0.70710677
        %v468 = vmul.f32 %v385, 0.70710677
        %v469 = vmul.f32 %v388, 0.70710677
        %v470 = vmul.f32 %v390, 0.70710677
        %v471 = vmul.f32 %v393, 0.70710677
        %v472 = vmul.f32 %v395, 0.70710677
        %v473 = vmul.f32 %v398, 0.70710677
        %v474 = vmul.f32 %v400, 0.70710677
        %v475 = vmul.f32 %v403, 0.70710677
        %v476 = vmul.f32 %v405, 0.70710677
        %v477 = vmul.f32 %v408, 0.70710677
        %v478 = vmul.f32 %v410, 0.70710677
        %v479 = vmul.f32 %v413, 0.70710677
        %v480 = vmul.f32 %v415, 0.70710677
        %v481 = vmul.f32 %v418, 0.70710677
        %v482 = vmul.f32 %v420, 0.70710677
        %v483 = vmul.f32 %v423, 0.70710677
        %v484 = vmul.f32 %v425, 0.70710677
        %v485 = vmul.f32 %v428, 0.70710677
        %v486 = vmul.f32 %v430, 0.70710677
        %v487 = vmul.f32 %v433, 0.70710677
        %v488 = vmul.f32 %v435, 0.70710677
        %v489 = vmul.f32 %v463, %v463
        %v490 = vmin.f32 16.0, %v489
        %v491 = vmul.f32 %v490, 2.1237322e-06
        %v492 = vadd.f32 %v491, 0.00028619796
        %v493 = vmul.f32 %v490, %v492
        %v494 = vadd.f32 %v493, 0.0036580483
        %v495 = vmul.f32 %v490, %v494
        %v496 = vadd.f32 %v495, 0.05243302
        %v497 = vmul.f32 %v490, %v496
        %v498 = vadd.f32 %v497, 0.18741608
        %v499 = vmul.f32 %v490, %v498
        %v500 = vadd.f32 %v499, 1.1283791
        %v501 = vmul.f32 %v463, %v500
        %v502 = vmul.f32 %v490, 3.8918573e-05
        %v503 = vadd.f32 %v502, 0.001143296
        %v504 = vmul.f32 %v490, %v503
        %v505 = vadd.f32 %v504, 0.014752088
        %v506 = vmul.f32 %v490, %v505
        %v507 = vadd.f32 %v506, 0.112945676
        %v508 = vmul.f32 %v490, %v507
        %v509 = vadd.f32 %v508, 0.4994258
        %v510 = vmul.f32 %v490, %v509
        %v511 = vadd.f32 %v510, 1.0
        %v512 = vrcp.pop %v511
        %v513 = vmul.f32 %v511, %v512
        %v514 = vsub.f32 1.0, %v513
        %v515 = vmul.f32 %v512, %v514
        %v516 = vadd.f32 %v512, %v515
        %vm517 = vweird.f32 %v511
        %vm518 = vweird.f32 %v512
        %vm519 = vmor %vm517, %vm518
        %v520 = vsel %vm519, %v512, %v516
        %v521 = vand.u32 2147483647, %v511
        %vm522 = vcmp.eq.f32.partialorder %v521, 8.507059e+37
        %v523 = vand.u32 %v511, 2147483648
        %v524 = vor.u32 1.1754944e-38, %v523
        %v525 = vsel %vm522, %v524, %v520
        %v526 = vmul.f32 %v501, %v525
        %v527 = vmin.f32 %v526, 1.0
        %v528 = vmax.f32 %v527, -1.0
        %v529 = vmul.f32 %v464, %v464
        %v530 = vmin.f32 16.0, %v529
        %v531 = vmul.f32 %v530, 2.1237322e-06
        %v532 = vadd.f32 %v531, 0.00028619796
        %v533 = vmul.f32 %v530, %v532
        %v534 = vadd.f32 %v533, 0.0036580483
        %v535 = vmul.f32 %v530, %v534
        %v536 = vadd.f32 %v535, 0.05243302
        %v537 = vmul.f32 %v530, %v536
        %v538 = vadd.f32 %v537, 0.18741608
        %v539 = vmul.f32 %v530, %v538
        %v540 = vadd.f32 %v539, 1.1283791
        %v541 = vmul.f32 %v464, %v540
        %v542 = vmul.f32 %v530, 3.8918573e-05
        %v543 = vadd.f32 %v542, 0.001143296
        %v544 = vmul.f32 %v530, %v543
        %v545 = vadd.f32 %v544, 0.014752088
        %v546 = vmul.f32 %v530, %v545
        %v547 = vadd.f32 %v546, 0.112945676
        %v548 = vmul.f32 %v530, %v547
        %v549 = vadd.f32 %v548, 0.4994258
        %v550 = vmul.f32 %v530, %v549
        %v551 = vadd.f32 %v550, 1.0
        %v552 = vrcp.pop %v551
        %v553 = vmul.f32 %v551, %v552
        %v554 = vsub.f32 1.0, %v553
        %v555 = vmul.f32 %v552, %v554
        %v556 = vadd.f32 %v552, %v555
        %vm557 = vweird.f32 %v551
        %vm558 = vweird.f32 %v552
        %vm559 = vmor %vm557, %vm558
        %v560 = vsel %vm559, %v552, %v556
        %v561 = vand.u32 2147483647, %v551
        %vm562 = vcmp.eq.f32.partialorder %v561, 8.507059e+37
        %v563 = vand.u32 %v551, 2147483648
        %v564 = vor.u32 1.1754944e-38, %v563
        %v565 = vsel %vm562, %v564, %v560
        %v566 = vmul.f32 %v541, %v565
        %v567 = vmin.f32 %v566, 1.0
        %v568 = vmax.f32 %v567, -1.0
        %v569 = vmul.f32 %v465, %v465
        %v570 = vmin.f32 16.0, %v569
        %v571 = vmul.f32 %v570, 2.1237322e-06
        %v572 = vadd.f32 %v571, 0.00028619796
        %v573 = vmul.f32 %v570, %v572
        %v574 = vadd.f32 %v573, 0.0036580483
        %v575 = vmul.f32 %v570, %v574
        %v576 = vadd.f32 %v575, 0.05243302
        %v577 = vmul.f32 %v570, %v576
        %v578 = vadd.f32 %v577, 0.18741608
        %v579 = vmul.f32 %v570, %v578
        %v580 = vadd.f32 %v579, 1.1283791
        %v581 = vmul.f32 %v465, %v580
        %v582 = vmul.f32 %v570, 3.8918573e-05
        %v583 = vadd.f32 %v582, 0.001143296
        %v584 = vmul.f32 %v570, %v583
        %v585 = vadd.f32 %v584, 0.014752088
        %v586 = vmul.f32 %v570, %v585
        %v587 = vadd.f32 %v586, 0.112945676
        %v588 = vmul.f32 %v570, %v587
        %v589 = vadd.f32 %v588, 0.4994258
        %v590 = vmul.f32 %v570, %v589
        %v591 = vadd.f32 %v590, 1.0
        %v592 = vrcp.pop %v591
        %v593 = vmul.f32 %v591, %v592
        %v594 = vsub.f32 1.0, %v593
        %v595 = vmul.f32 %v592, %v594
        %v596 = vadd.f32 %v592, %v595
        %vm597 = vweird.f32 %v591
        %vm598 = vweird.f32 %v592
        %vm599 = vmor %vm597, %vm598
        %v600 = vsel %vm599, %v592, %v596
        %v601 = vand.u32 2147483647, %v591
        %vm602 = vcmp.eq.f32.partialorder %v601, 8.507059e+37
        %v603 = vand.u32 %v591, 2147483648
        %v604 = vor.u32 1.1754944e-38, %v603
        %v605 = vsel %vm602, %v604, %v600
        %v606 = vmul.f32 %v581, %v605
        %v607 = vmin.f32 %v606, 1.0
        %v608 = vmax.f32 %v607, -1.0
        %v609 = vmul.f32 %v466, %v466
        %v610 = vmin.f32 16.0, %v609
        %v611 = vmul.f32 %v610, 2.1237322e-06
        %v612 = vadd.f32 %v611, 0.00028619796
        %v613 = vmul.f32 %v610, %v612
        %v614 = vadd.f32 %v613, 0.0036580483
        %v615 = vmul.f32 %v610, %v614
        %v616 = vadd.f32 %v615, 0.05243302
        %v617 = vmul.f32 %v610, %v616
        %v618 = vadd.f32 %v617, 0.18741608
        %v619 = vmul.f32 %v610, %v618
        %v620 = vadd.f32 %v619, 1.1283791
        %v621 = vmul.f32 %v466, %v620
        %v622 = vmul.f32 %v610, 3.8918573e-05
        %v623 = vadd.f32 %v622, 0.001143296
        %v624 = vmul.f32 %v610, %v623
        %v625 = vadd.f32 %v624, 0.014752088
        %v626 = vmul.f32 %v610, %v625
        %v627 = vadd.f32 %v626, 0.112945676
        %v628 = vmul.f32 %v610, %v627
        %v629 = vadd.f32 %v628, 0.4994258
        %v630 = vmul.f32 %v610, %v629
        %v631 = vadd.f32 %v630, 1.0
        %v632 = vrcp.pop %v631
        %v633 = vmul.f32 %v631, %v632
        %v634 = vsub.f32 1.0, %v633
        %v635 = vmul.f32 %v632, %v634
        %v636 = vadd.f32 %v632, %v635
        %vm637 = vweird.f32 %v631
        %vm638 = vweird.f32 %v632
        %vm639 = vmor %vm637, %vm638
        %v640 = vsel %vm639, %v632, %v636
        %v641 = vand.u32 2147483647, %v631
        %vm642 = vcmp.eq.f32.partialorder %v641, 8.507059e+37
        %v643 = vand.u32 %v631, 2147483648
        %v644 = vor.u32 1.1754944e-38, %v643
        %v645 = vsel %vm642, %v644, %v640
        %v646 = vmul.f32 %v621, %v645
        %v647 = vmin.f32 %v646, 1.0
        %v648 = vmax.f32 %v647, -1.0
        %v649 = vmul.f32 %v467, %v467
        %v650 = vmin.f32 16.0, %v649
        %v651 = vmul.f32 %v650, 2.1237322e-06
        %v652 = vadd.f32 %v651, 0.00028619796
        %v653 = vmul.f32 %v650, %v652
        %v654 = vadd.f32 %v653, 0.0036580483
        %v655 = vmul.f32 %v650, %v654
        %v656 = vadd.f32 %v655, 0.05243302
        %v657 = vmul.f32 %v650, %v656
        %v658 = vadd.f32 %v657, 0.18741608
        %v659 = vmul.f32 %v650, %v658
        %v660 = vadd.f32 %v659, 1.1283791
        %v661 = vmul.f32 %v467, %v660
        %v662 = vmul.f32 %v650, 3.8918573e-05
        %v663 = vadd.f32 %v662, 0.001143296
        %v664 = vmul.f32 %v650, %v663
        %v665 = vadd.f32 %v664, 0.014752088
        %v666 = vmul.f32 %v650, %v665
        %v667 = vadd.f32 %v666, 0.112945676
        %v668 = vmul.f32 %v650, %v667
        %v669 = vadd.f32 %v668, 0.4994258
        %v670 = vmul.f32 %v650, %v669
        %v671 = vadd.f32 %v670, 1.0
        %v672 = vrcp.pop %v671
        %v673 = vmul.f32 %v671, %v672
        %v674 = vsub.f32 1.0, %v673
        %v675 = vmul.f32 %v672, %v674
        %v676 = vadd.f32 %v672, %v675
        %vm677 = vweird.f32 %v671
        %vm678 = vweird.f32 %v672
        %vm679 = vmor %vm677, %vm678
        %v680 = vsel %vm679, %v672, %v676
        %v681 = vand.u32 2147483647, %v671
        %vm682 = vcmp.eq.f32.partialorder %v681, 8.507059e+37
        %v683 = vand.u32 %v671, 2147483648
        %v684 = vor.u32 1.1754944e-38, %v683
        %v685 = vsel %vm682, %v684, %v680
        %v686 = vmul.f32 %v661, %v685
        %v687 = vmin.f32 %v686, 1.0
        %v688 = vmax.f32 %v687, -1.0
        %v689 = vmul.f32 %v468, %v468
        %v690 = vmin.f32 16.0, %v689
        %v691 = vmul.f32 %v690, 2.1237322e-06
        %v692 = vadd.f32 %v691, 0.00028619796
        %v693 = vmul.f32 %v690, %v692
        %v694 = vadd.f32 %v693, 0.0036580483
        %v695 = vmul.f32 %v690, %v694
        %v696 = vadd.f32 %v695, 0.05243302
        %v697 = vmul.f32 %v690, %v696
        %v698 = vadd.f32 %v697, 0.18741608
        %v699 = vmul.f32 %v690, %v698
        %v700 = vadd.f32 %v699, 1.1283791
        %v701 = vmul.f32 %v468, %v700
        %v702 = vmul.f32 %v690, 3.8918573e-05
        %v703 = vadd.f32 %v702, 0.001143296
        %v704 = vmul.f32 %v690, %v703
        %v705 = vadd.f32 %v704, 0.014752088
        %v706 = vmul.f32 %v690, %v705
        %v707 = vadd.f32 %v706, 0.112945676
        %v708 = vmul.f32 %v690, %v707
        %v709 = vadd.f32 %v708, 0.4994258
        %v710 = vmul.f32 %v690, %v709
        %v711 = vadd.f32 %v710, 1.0
        %v712 = vrcp.pop %v711
        %v713 = vmul.f32 %v711, %v712
        %v714 = vsub.f32 1.0, %v713
        %v715 = vmul.f32 %v712, %v714
        %v716 = vadd.f32 %v712, %v715
        %vm717 = vweird.f32 %v711
        %vm718 = vweird.f32 %v712
        %vm719 = vmor %vm717, %vm718
        %v720 = vsel %vm719, %v712, %v716
        %v721 = vand.u32 2147483647, %v711
        %vm722 = vcmp.eq.f32.partialorder %v721, 8.507059e+37
        %v723 = vand.u32 %v711, 2147483648
        %v724 = vor.u32 1.1754944e-38, %v723
        %v725 = vsel %vm722, %v724, %v720
        %v726 = vmul.f32 %v701, %v725
        %v727 = vmin.f32 %v726, 1.0
        %v728 = vmax.f32 %v727, -1.0
        %v729 = vmul.f32 %v469, %v469
        %v730 = vmin.f32 16.0, %v729
        %v731 = vmul.f32 %v730, 2.1237322e-06
        %v732 = vadd.f32 %v731, 0.00028619796
        %v733 = vmul.f32 %v730, %v732
        %v734 = vadd.f32 %v733, 0.0036580483
        %v735 = vmul.f32 %v730, %v734
        %v736 = vadd.f32 %v735, 0.05243302
        %v737 = vmul.f32 %v730, %v736
        %v738 = vadd.f32 %v737, 0.18741608
        %v739 = vmul.f32 %v730, %v738
        %v740 = vadd.f32 %v739, 1.1283791
        %v741 = vmul.f32 %v469, %v740
        %v742 = vmul.f32 %v730, 3.8918573e-05
        %v743 = vadd.f32 %v742, 0.001143296
        %v744 = vmul.f32 %v730, %v743
        %v745 = vadd.f32 %v744, 0.014752088
        %v746 = vmul.f32 %v730, %v745
        %v747 = vadd.f32 %v746, 0.112945676
        %v748 = vmul.f32 %v730, %v747
        %v749 = vadd.f32 %v748, 0.4994258
        %v750 = vmul.f32 %v730, %v749
        %v751 = vadd.f32 %v750, 1.0
        %v752 = vrcp.pop %v751
        %v753 = vmul.f32 %v751, %v752
        %v754 = vsub.f32 1.0, %v753
        %v755 = vmul.f32 %v752, %v754
        %v756 = vadd.f32 %v752, %v755
        %vm757 = vweird.f32 %v751
        %vm758 = vweird.f32 %v752
        %vm759 = vmor %vm757, %vm758
        %v760 = vsel %vm759, %v752, %v756
        %v761 = vand.u32 2147483647, %v751
        %vm762 = vcmp.eq.f32.partialorder %v761, 8.507059e+37
        %v763 = vand.u32 %v751, 2147483648
        %v764 = vor.u32 1.1754944e-38, %v763
        %v765 = vsel %vm762, %v764, %v760
        %v766 = vmul.f32 %v741, %v765
        %v767 = vmin.f32 %v766, 1.0
        %v768 = vmax.f32 %v767, -1.0
        %v769 = vmul.f32 %v470, %v470
        %v770 = vmin.f32 16.0, %v769
        %v771 = vmul.f32 %v770, 2.1237322e-06
        %v772 = vadd.f32 %v771, 0.00028619796
        %v773 = vmul.f32 %v770, %v772
        %v774 = vadd.f32 %v773, 0.0036580483
        %v775 = vmul.f32 %v770, %v774
        %v776 = vadd.f32 %v775, 0.05243302
        %v777 = vmul.f32 %v770, %v776
        %v778 = vadd.f32 %v777, 0.18741608
        %v779 = vmul.f32 %v770, %v778
        %v780 = vadd.f32 %v779, 1.1283791
        %v781 = vmul.f32 %v470, %v780
        %v782 = vmul.f32 %v770, 3.8918573e-05
        %v783 = vadd.f32 %v782, 0.001143296
        %v784 = vmul.f32 %v770, %v783
        %v785 = vadd.f32 %v784, 0.014752088
        %v786 = vmul.f32 %v770, %v785
        %v787 = vadd.f32 %v786, 0.112945676
        %v788 = vmul.f32 %v770, %v787
        %v789 = vadd.f32 %v788, 0.4994258
        %v790 = vmul.f32 %v770, %v789
        %v791 = vadd.f32 %v790, 1.0
        %v792 = vrcp.pop %v791
        %v793 = vmul.f32 %v791, %v792
        %v794 = vsub.f32 1.0, %v793
        %v795 = vmul.f32 %v792, %v794
        %v796 = vadd.f32 %v792, %v795
        %vm797 = vweird.f32 %v791
        %vm798 = vweird.f32 %v792
        %vm799 = vmor %vm797, %vm798
        %v800 = vsel %vm799, %v792, %v796
        %v801 = vand.u32 2147483647, %v791
        %vm802 = vcmp.eq.f32.partialorder %v801, 8.507059e+37
        %v803 = vand.u32 %v791, 2147483648
        %v804 = vor.u32 1.1754944e-38, %v803
        %v805 = vsel %vm802, %v804, %v800
        %v806 = vmul.f32 %v781, %v805
        %v807 = vmin.f32 %v806, 1.0
        %v808 = vmax.f32 %v807, -1.0
        %v809 = vmul.f32 %v471, %v471
        %v810 = vmin.f32 16.0, %v809
        %v811 = vmul.f32 %v810, 2.1237322e-06
        %v812 = vadd.f32 %v811, 0.00028619796
        %v813 = vmul.f32 %v810, %v812
        %v814 = vadd.f32 %v813, 0.0036580483
        %v815 = vmul.f32 %v810, %v814
        %v816 = vadd.f32 %v815, 0.05243302
        %v817 = vmul.f32 %v810, %v816
        %v818 = vadd.f32 %v817, 0.18741608
        %v819 = vmul.f32 %v810, %v818
        %v820 = vadd.f32 %v819, 1.1283791
        %v821 = vmul.f32 %v471, %v820
        %v822 = vmul.f32 %v810, 3.8918573e-05
        %v823 = vadd.f32 %v822, 0.001143296
        %v824 = vmul.f32 %v810, %v823
        %v825 = vadd.f32 %v824, 0.014752088
        %v826 = vmul.f32 %v810, %v825
        %v827 = vadd.f32 %v826, 0.112945676
        %v828 = vmul.f32 %v810, %v827
        %v829 = vadd.f32 %v828, 0.4994258
        %v830 = vmul.f32 %v810, %v829
        %v831 = vadd.f32 %v830, 1.0
        %v832 = vrcp.pop %v831
        %v833 = vmul.f32 %v831, %v832
        %v834 = vsub.f32 1.0, %v833
        %v835 = vmul.f32 %v832, %v834
        %v836 = vadd.f32 %v832, %v835
        %vm837 = vweird.f32 %v831
        %vm838 = vweird.f32 %v832
        %vm839 = vmor %vm837, %vm838
        %v840 = vsel %vm839, %v832, %v836
        %v841 = vand.u32 2147483647, %v831
        %vm842 = vcmp.eq.f32.partialorder %v841, 8.507059e+37
        %v843 = vand.u32 %v831, 2147483648
        %v844 = vor.u32 1.1754944e-38, %v843
        %v845 = vsel %vm842, %v844, %v840
        %v846 = vmul.f32 %v821, %v845
        %v847 = vmin.f32 %v846, 1.0
        %v848 = vmax.f32 %v847, -1.0
        %v849 = vmul.f32 %v472, %v472
        %v850 = vmin.f32 16.0, %v849
        %v851 = vmul.f32 %v850, 2.1237322e-06
        %v852 = vadd.f32 %v851, 0.00028619796
        %v853 = vmul.f32 %v850, %v852
        %v854 = vadd.f32 %v853, 0.0036580483
        %v855 = vmul.f32 %v850, %v854
        %v856 = vadd.f32 %v855, 0.05243302
        %v857 = vmul.f32 %v850, %v856
        %v858 = vadd.f32 %v857, 0.18741608
        %v859 = vmul.f32 %v850, %v858
        %v860 = vadd.f32 %v859, 1.1283791
        %v861 = vmul.f32 %v472, %v860
        %v862 = vmul.f32 %v850, 3.8918573e-05
        %v863 = vadd.f32 %v862, 0.001143296
        %v864 = vmul.f32 %v850, %v863
        %v865 = vadd.f32 %v864, 0.014752088
        %v866 = vmul.f32 %v850, %v865
        %v867 = vadd.f32 %v866, 0.112945676
        %v868 = vmul.f32 %v850, %v867
        %v869 = vadd.f32 %v868, 0.4994258
        %v870 = vmul.f32 %v850, %v869
        %v871 = vadd.f32 %v870, 1.0
        %v872 = vrcp.pop %v871
        %v873 = vmul.f32 %v871, %v872
        %v874 = vsub.f32 1.0, %v873
        %v875 = vmul.f32 %v872, %v874
        %v876 = vadd.f32 %v872, %v875
        %vm877 = vweird.f32 %v871
        %vm878 = vweird.f32 %v872
        %vm879 = vmor %vm877, %vm878
        %v880 = vsel %vm879, %v872, %v876
        %v881 = vand.u32 2147483647, %v871
        %vm882 = vcmp.eq.f32.partialorder %v881, 8.507059e+37
        %v883 = vand.u32 %v871, 2147483648
        %v884 = vor.u32 1.1754944e-38, %v883
        %v885 = vsel %vm882, %v884, %v880
        %v886 = vmul.f32 %v861, %v885
        %v887 = vmin.f32 %v886, 1.0
        %v888 = vmax.f32 %v887, -1.0
        %v889 = vmul.f32 %v473, %v473
        %v890 = vmin.f32 16.0, %v889
        %v891 = vmul.f32 %v890, 2.1237322e-06
        %v892 = vadd.f32 %v891, 0.00028619796
        %v893 = vmul.f32 %v890, %v892
        %v894 = vadd.f32 %v893, 0.0036580483
        %v895 = vmul.f32 %v890, %v894
        %v896 = vadd.f32 %v895, 0.05243302
        %v897 = vmul.f32 %v890, %v896
        %v898 = vadd.f32 %v897, 0.18741608
        %v899 = vmul.f32 %v890, %v898
        %v900 = vadd.f32 %v899, 1.1283791
        %v901 = vmul.f32 %v473, %v900
        %v902 = vmul.f32 %v890, 3.8918573e-05
        %v903 = vadd.f32 %v902, 0.001143296
        %v904 = vmul.f32 %v890, %v903
        %v905 = vadd.f32 %v904, 0.014752088
        %v906 = vmul.f32 %v890, %v905
        %v907 = vadd.f32 %v906, 0.112945676
        %v908 = vmul.f32 %v890, %v907
        %v909 = vadd.f32 %v908, 0.4994258
        %v910 = vmul.f32 %v890, %v909
        %v911 = vadd.f32 %v910, 1.0
        %v912 = vrcp.pop %v911
        %v913 = vmul.f32 %v911, %v912
        %v914 = vsub.f32 1.0, %v913
        %v915 = vmul.f32 %v912, %v914
        %v916 = vadd.f32 %v912, %v915
        %vm917 = vweird.f32 %v911
        %vm918 = vweird.f32 %v912
        %vm919 = vmor %vm917, %vm918
        %v920 = vsel %vm919, %v912, %v916
        %v921 = vand.u32 2147483647, %v911
        %vm922 = vcmp.eq.f32.partialorder %v921, 8.507059e+37
        %v923 = vand.u32 %v911, 2147483648
        %v924 = vor.u32 1.1754944e-38, %v923
        %v925 = vsel %vm922, %v924, %v920
        %v926 = vmul.f32 %v901, %v925
        %v927 = vmin.f32 %v926, 1.0
        %v928 = vmax.f32 %v927, -1.0
        %v929 = vmul.f32 %v474, %v474
        %v930 = vmin.f32 16.0, %v929
        %v931 = vmul.f32 %v930, 2.1237322e-06
        %v932 = vadd.f32 %v931, 0.00028619796
        %v933 = vmul.f32 %v930, %v932
        %v934 = vadd.f32 %v933, 0.0036580483
        %v935 = vmul.f32 %v930, %v934
        %v936 = vadd.f32 %v935, 0.05243302
        %v937 = vmul.f32 %v930, %v936
        %v938 = vadd.f32 %v937, 0.18741608
        %v939 = vmul.f32 %v930, %v938
        %v940 = vadd.f32 %v939, 1.1283791
        %v941 = vmul.f32 %v474, %v940
        %v942 = vmul.f32 %v930, 3.8918573e-05
        %v943 = vadd.f32 %v942, 0.001143296
        %v944 = vmul.f32 %v930, %v943
        %v945 = vadd.f32 %v944, 0.014752088
        %v946 = vmul.f32 %v930, %v945
        %v947 = vadd.f32 %v946, 0.112945676
        %v948 = vmul.f32 %v930, %v947
        %v949 = vadd.f32 %v948, 0.4994258
        %v950 = vmul.f32 %v930, %v949
        %v951 = vadd.f32 %v950, 1.0
        %v952 = vrcp.pop %v951
        %v953 = vmul.f32 %v951, %v952
        %v954 = vsub.f32 1.0, %v953
        %v955 = vmul.f32 %v952, %v954
        %v956 = vadd.f32 %v952, %v955
        %vm957 = vweird.f32 %v951
        %vm958 = vweird.f32 %v952
        %vm959 = vmor %vm957, %vm958
        %v960 = vsel %vm959, %v952, %v956
        %v961 = vand.u32 2147483647, %v951
        %vm962 = vcmp.eq.f32.partialorder %v961, 8.507059e+37
        %v963 = vand.u32 %v951, 2147483648
        %v964 = vor.u32 1.1754944e-38, %v963
        %v965 = vsel %vm962, %v964, %v960
        %v966 = vmul.f32 %v941, %v965
        %v967 = vmin.f32 %v966, 1.0
        %v968 = vmax.f32 %v967, -1.0
        %v969 = vmul.f32 %v475, %v475
        %v970 = vmin.f32 16.0, %v969
        %v971 = vmul.f32 %v970, 2.1237322e-06
        %v972 = vadd.f32 %v971, 0.00028619796
        %v973 = vmul.f32 %v970, %v972
        %v974 = vadd.f32 %v973, 0.0036580483
        %v975 = vmul.f32 %v970, %v974
        %v976 = vadd.f32 %v975, 0.05243302
        %v977 = vmul.f32 %v970, %v976
        %v978 = vadd.f32 %v977, 0.18741608
        %v979 = vmul.f32 %v970, %v978
        %v980 = vadd.f32 %v979, 1.1283791
        %v981 = vmul.f32 %v475, %v980
        %v982 = vmul.f32 %v970, 3.8918573e-05
        %v983 = vadd.f32 %v982, 0.001143296
        %v984 = vmul.f32 %v970, %v983
        %v985 = vadd.f32 %v984, 0.014752088
        %v986 = vmul.f32 %v970, %v985
        %v987 = vadd.f32 %v986, 0.112945676
        %v988 = vmul.f32 %v970, %v987
        %v989 = vadd.f32 %v988, 0.4994258
        %v990 = vmul.f32 %v970, %v989
        %v991 = vadd.f32 %v990, 1.0
        %v992 = vrcp.pop %v991
        %v993 = vmul.f32 %v991, %v992
        %v994 = vsub.f32 1.0, %v993
        %v995 = vmul.f32 %v992, %v994
        %v996 = vadd.f32 %v992, %v995
        %vm997 = vweird.f32 %v991
        %vm998 = vweird.f32 %v992
        %vm999 = vmor %vm997, %vm998
        %v1000 = vsel %vm999, %v992, %v996
        %v1001 = vand.u32 2147483647, %v991
        %vm1002 = vcmp.eq.f32.partialorder %v1001, 8.507059e+37
        %v1003 = vand.u32 %v991, 2147483648
        %v1004 = vor.u32 1.1754944e-38, %v1003
        %v1005 = vsel %vm1002, %v1004, %v1000
        %v1006 = vmul.f32 %v981, %v1005
        %v1007 = vmin.f32 %v1006, 1.0
        %v1008 = vmax.f32 %v1007, -1.0
        %v1009 = vmul.f32 %v476, %v476
        %v1010 = vmin.f32 16.0, %v1009
        %v1011 = vmul.f32 %v1010, 2.1237322e-06
        %v1012 = vadd.f32 %v1011, 0.00028619796
        %v1013 = vmul.f32 %v1010, %v1012
        %v1014 = vadd.f32 %v1013, 0.0036580483
        %v1015 = vmul.f32 %v1010, %v1014
        %v1016 = vadd.f32 %v1015, 0.05243302
        %v1017 = vmul.f32 %v1010, %v1016
        %v1018 = vadd.f32 %v1017, 0.18741608
        %v1019 = vmul.f32 %v1010, %v1018
        %v1020 = vadd.f32 %v1019, 1.1283791
        %v1021 = vmul.f32 %v476, %v1020
        %v1022 = vmul.f32 %v1010, 3.8918573e-05
        %v1023 = vadd.f32 %v1022, 0.001143296
        %v1024 = vmul.f32 %v1010, %v1023
        %v1025 = vadd.f32 %v1024, 0.014752088
        %v1026 = vmul.f32 %v1010, %v1025
        %v1027 = vadd.f32 %v1026, 0.112945676
        %v1028 = vmul.f32 %v1010, %v1027
        %v1029 = vadd.f32 %v1028, 0.4994258
        %v1030 = vmul.f32 %v1010, %v1029
        %v1031 = vadd.f32 %v1030, 1.0
        %v1032 = vrcp.pop %v1031
        %v1033 = vmul.f32 %v1031, %v1032
        %v1034 = vsub.f32 1.0, %v1033
        %v1035 = vmul.f32 %v1032, %v1034
        %v1036 = vadd.f32 %v1032, %v1035
        %vm1037 = vweird.f32 %v1031
        %vm1038 = vweird.f32 %v1032
        %vm1039 = vmor %vm1037, %vm1038
        %v1040 = vsel %vm1039, %v1032, %v1036
        %v1041 = vand.u32 2147483647, %v1031
        %vm1042 = vcmp.eq.f32.partialorder %v1041, 8.507059e+37
        %v1043 = vand.u32 %v1031, 2147483648
        %v1044 = vor.u32 1.1754944e-38, %v1043
        %v1045 = vsel %vm1042, %v1044, %v1040
        %v1046 = vmul.f32 %v1021, %v1045
        %v1047 = vmin.f32 %v1046, 1.0
        %v1048 = vmax.f32 %v1047, -1.0
        %v1049 = vmul.f32 %v477, %v477
        %v1050 = vmin.f32 16.0, %v1049
        %v1051 = vmul.f32 %v1050, 2.1237322e-06
        %v1052 = vadd.f32 %v1051, 0.00028619796
        %v1053 = vmul.f32 %v1050, %v1052
        %v1054 = vadd.f32 %v1053, 0.0036580483
        %v1055 = vmul.f32 %v1050, %v1054
        %v1056 = vadd.f32 %v1055, 0.05243302
        %v1057 = vmul.f32 %v1050, %v1056
        %v1058 = vadd.f32 %v1057, 0.18741608
        %v1059 = vmul.f32 %v1050, %v1058
        %v1060 = vadd.f32 %v1059, 1.1283791
        %v1061 = vmul.f32 %v477, %v1060
        %v1062 = vmul.f32 %v1050, 3.8918573e-05
        %v1063 = vadd.f32 %v1062, 0.001143296
        %v1064 = vmul.f32 %v1050, %v1063
        %v1065 = vadd.f32 %v1064, 0.014752088
        %v1066 = vmul.f32 %v1050, %v1065
        %v1067 = vadd.f32 %v1066, 0.112945676
        %v1068 = vmul.f32 %v1050, %v1067
        %v1069 = vadd.f32 %v1068, 0.4994258
        %v1070 = vmul.f32 %v1050, %v1069
        %v1071 = vadd.f32 %v1070, 1.0
        %v1072 = vrcp.pop %v1071
        %v1073 = vmul.f32 %v1071, %v1072
        %v1074 = vsub.f32 1.0, %v1073
        %v1075 = vmul.f32 %v1072, %v1074
        %v1076 = vadd.f32 %v1072, %v1075
        %vm1077 = vweird.f32 %v1071
        %vm1078 = vweird.f32 %v1072
        %vm1079 = vmor %vm1077, %vm1078
        %v1080 = vsel %vm1079, %v1072, %v1076
        %v1081 = vand.u32 2147483647, %v1071
        %vm1082 = vcmp.eq.f32.partialorder %v1081, 8.507059e+37
        %v1083 = vand.u32 %v1071, 2147483648
        %v1084 = vor.u32 1.1754944e-38, %v1083
        %v1085 = vsel %vm1082, %v1084, %v1080
        %v1086 = vmul.f32 %v1061, %v1085
        %v1087 = vmin.f32 %v1086, 1.0
        %v1088 = vmax.f32 %v1087, -1.0
        %v1089 = vmul.f32 %v478, %v478
        %v1090 = vmin.f32 16.0, %v1089
        %v1091 = vmul.f32 %v1090, 2.1237322e-06
        %v1092 = vadd.f32 %v1091, 0.00028619796
        %v1093 = vmul.f32 %v1090, %v1092
        %v1094 = vadd.f32 %v1093, 0.0036580483
        %v1095 = vmul.f32 %v1090, %v1094
        %v1096 = vadd.f32 %v1095, 0.05243302
        %v1097 = vmul.f32 %v1090, %v1096
        %v1098 = vadd.f32 %v1097, 0.18741608
        %v1099 = vmul.f32 %v1090, %v1098
        %v1100 = vadd.f32 %v1099, 1.1283791
        %v1101 = vmul.f32 %v478, %v1100
        %v1102 = vmul.f32 %v1090, 3.8918573e-05
        %v1103 = vadd.f32 %v1102, 0.001143296
        %v1104 = vmul.f32 %v1090, %v1103
        %v1105 = vadd.f32 %v1104, 0.014752088
        %v1106 = vmul.f32 %v1090, %v1105
        %v1107 = vadd.f32 %v1106, 0.112945676
        %v1108 = vmul.f32 %v1090, %v1107
        %v1109 = vadd.f32 %v1108, 0.4994258
        %v1110 = vmul.f32 %v1090, %v1109
        %v1111 = vadd.f32 %v1110, 1.0
        %v1112 = vrcp.pop %v1111
        %v1113 = vmul.f32 %v1111, %v1112
        %v1114 = vsub.f32 1.0, %v1113
        %v1115 = vmul.f32 %v1112, %v1114
        %v1116 = vadd.f32 %v1112, %v1115
        %vm1117 = vweird.f32 %v1111
        %vm1118 = vweird.f32 %v1112
        %vm1119 = vmor %vm1117, %vm1118
        %v1120 = vsel %vm1119, %v1112, %v1116
        %v1121 = vand.u32 2147483647, %v1111
        %vm1122 = vcmp.eq.f32.partialorder %v1121, 8.507059e+37
        %v1123 = vand.u32 %v1111, 2147483648
        %v1124 = vor.u32 1.1754944e-38, %v1123
        %v1125 = vsel %vm1122, %v1124, %v1120
        %v1126 = vmul.f32 %v1101, %v1125
        %v1127 = vmin.f32 %v1126, 1.0
        %v1128 = vmax.f32 %v1127, -1.0
        %v1129 = vmul.f32 %v479, %v479
        %v1130 = vmin.f32 16.0, %v1129
        %v1131 = vmul.f32 %v1130, 2.1237322e-06
        %v1132 = vadd.f32 %v1131, 0.00028619796
        %v1133 = vmul.f32 %v1130, %v1132
        %v1134 = vadd.f32 %v1133, 0.0036580483
        %v1135 = vmul.f32 %v1130, %v1134
        %v1136 = vadd.f32 %v1135, 0.05243302
        %v1137 = vmul.f32 %v1130, %v1136
        %v1138 = vadd.f32 %v1137, 0.18741608
        %v1139 = vmul.f32 %v1130, %v1138
        %v1140 = vadd.f32 %v1139, 1.1283791
        %v1141 = vmul.f32 %v479, %v1140
        %v1142 = vmul.f32 %v1130, 3.8918573e-05
        %v1143 = vadd.f32 %v1142, 0.001143296
        %v1144 = vmul.f32 %v1130, %v1143
        %v1145 = vadd.f32 %v1144, 0.014752088
        %v1146 = vmul.f32 %v1130, %v1145
        %v1147 = vadd.f32 %v1146, 0.112945676
        %v1148 = vmul.f32 %v1130, %v1147
        %v1149 = vadd.f32 %v1148, 0.4994258
        %v1150 = vmul.f32 %v1130, %v1149
        %v1151 = vadd.f32 %v1150, 1.0
        %v1152 = vrcp.pop %v1151
        %v1153 = vmul.f32 %v1151, %v1152
        %v1154 = vsub.f32 1.0, %v1153
        %v1155 = vmul.f32 %v1152, %v1154
        %v1156 = vadd.f32 %v1152, %v1155
        %vm1157 = vweird.f32 %v1151
        %vm1158 = vweird.f32 %v1152
        %vm1159 = vmor %vm1157, %vm1158
        %v1160 = vsel %vm1159, %v1152, %v1156
        %v1161 = vand.u32 2147483647, %v1151
        %vm1162 = vcmp.eq.f32.partialorder %v1161, 8.507059e+37
        %v1163 = vand.u32 %v1151, 2147483648
        %v1164 = vor.u32 1.1754944e-38, %v1163
        %v1165 = vsel %vm1162, %v1164, %v1160
        %v1166 = vmul.f32 %v1141, %v1165
        %v1167 = vmin.f32 %v1166, 1.0
        %v1168 = vmax.f32 %v1167, -1.0
        %v1169 = vmul.f32 %v480, %v480
        %v1170 = vmin.f32 16.0, %v1169
        %v1171 = vmul.f32 %v1170, 2.1237322e-06
        %v1172 = vadd.f32 %v1171, 0.00028619796
        %v1173 = vmul.f32 %v1170, %v1172
        %v1174 = vadd.f32 %v1173, 0.0036580483
        %v1175 = vmul.f32 %v1170, %v1174
        %v1176 = vadd.f32 %v1175, 0.05243302
        %v1177 = vmul.f32 %v1170, %v1176
        %v1178 = vadd.f32 %v1177, 0.18741608
        %v1179 = vmul.f32 %v1170, %v1178
        %v1180 = vadd.f32 %v1179, 1.1283791
        %v1181 = vmul.f32 %v480, %v1180
        %v1182 = vmul.f32 %v1170, 3.8918573e-05
        %v1183 = vadd.f32 %v1182, 0.001143296
        %v1184 = vmul.f32 %v1170, %v1183
        %v1185 = vadd.f32 %v1184, 0.014752088
        %v1186 = vmul.f32 %v1170, %v1185
        %v1187 = vadd.f32 %v1186, 0.112945676
        %v1188 = vmul.f32 %v1170, %v1187
        %v1189 = vadd.f32 %v1188, 0.4994258
        %v1190 = vmul.f32 %v1170, %v1189
        %v1191 = vadd.f32 %v1190, 1.0
        %v1192 = vrcp.pop %v1191
        %v1193 = vmul.f32 %v1191, %v1192
        %v1194 = vsub.f32 1.0, %v1193
        %v1195 = vmul.f32 %v1192, %v1194
        %v1196 = vadd.f32 %v1192, %v1195
        %vm1197 = vweird.f32 %v1191
        %vm1198 = vweird.f32 %v1192
        %vm1199 = vmor %vm1197, %vm1198
        %v1200 = vsel %vm1199, %v1192, %v1196
        %v1201 = vand.u32 2147483647, %v1191
        %vm1202 = vcmp.eq.f32.partialorder %v1201, 8.507059e+37
        %v1203 = vand.u32 %v1191, 2147483648
        %v1204 = vor.u32 1.1754944e-38, %v1203
        %v1205 = vsel %vm1202, %v1204, %v1200
        %v1206 = vmul.f32 %v1181, %v1205
        %v1207 = vmin.f32 %v1206, 1.0
        %v1208 = vmax.f32 %v1207, -1.0
        %v1209 = vmul.f32 %v481, %v481
        %v1210 = vmin.f32 16.0, %v1209
        %v1211 = vmul.f32 %v1210, 2.1237322e-06
        %v1212 = vadd.f32 %v1211, 0.00028619796
        %v1213 = vmul.f32 %v1210, %v1212
        %v1214 = vadd.f32 %v1213, 0.0036580483
        %v1215 = vmul.f32 %v1210, %v1214
        %v1216 = vadd.f32 %v1215, 0.05243302
        %v1217 = vmul.f32 %v1210, %v1216
        %v1218 = vadd.f32 %v1217, 0.18741608
        %v1219 = vmul.f32 %v1210, %v1218
        %v1220 = vadd.f32 %v1219, 1.1283791
        %v1221 = vmul.f32 %v481, %v1220
        %v1222 = vmul.f32 %v1210, 3.8918573e-05
        %v1223 = vadd.f32 %v1222, 0.001143296
        %v1224 = vmul.f32 %v1210, %v1223
        %v1225 = vadd.f32 %v1224, 0.014752088
        %v1226 = vmul.f32 %v1210, %v1225
        %v1227 = vadd.f32 %v1226, 0.112945676
        %v1228 = vmul.f32 %v1210, %v1227
        %v1229 = vadd.f32 %v1228, 0.4994258
        %v1230 = vmul.f32 %v1210, %v1229
        %v1231 = vadd.f32 %v1230, 1.0
        %v1232 = vrcp.pop %v1231
        %v1233 = vmul.f32 %v1231, %v1232
        %v1234 = vsub.f32 1.0, %v1233
        %v1235 = vmul.f32 %v1232, %v1234
        %v1236 = vadd.f32 %v1232, %v1235
        %vm1237 = vweird.f32 %v1231
        %vm1238 = vweird.f32 %v1232
        %vm1239 = vmor %vm1237, %vm1238
        %v1240 = vsel %vm1239, %v1232, %v1236
        %v1241 = vand.u32 2147483647, %v1231
        %vm1242 = vcmp.eq.f32.partialorder %v1241, 8.507059e+37
        %v1243 = vand.u32 %v1231, 2147483648
        %v1244 = vor.u32 1.1754944e-38, %v1243
        %v1245 = vsel %vm1242, %v1244, %v1240
        %v1246 = vmul.f32 %v1221, %v1245
        %v1247 = vmin.f32 %v1246, 1.0
        %v1248 = vmax.f32 %v1247, -1.0
        %v1249 = vmul.f32 %v482, %v482
        %v1250 = vmin.f32 16.0, %v1249
        %v1251 = vmul.f32 %v1250, 2.1237322e-06
        %v1252 = vadd.f32 %v1251, 0.00028619796
        %v1253 = vmul.f32 %v1250, %v1252
        %v1254 = vadd.f32 %v1253, 0.0036580483
        %v1255 = vmul.f32 %v1250, %v1254
        %v1256 = vadd.f32 %v1255, 0.05243302
        %v1257 = vmul.f32 %v1250, %v1256
        %v1258 = vadd.f32 %v1257, 0.18741608
        %v1259 = vmul.f32 %v1250, %v1258
        %v1260 = vadd.f32 %v1259, 1.1283791
        %v1261 = vmul.f32 %v482, %v1260
        %v1262 = vmul.f32 %v1250, 3.8918573e-05
        %v1263 = vadd.f32 %v1262, 0.001143296
        %v1264 = vmul.f32 %v1250, %v1263
        %v1265 = vadd.f32 %v1264, 0.014752088
        %v1266 = vmul.f32 %v1250, %v1265
        %v1267 = vadd.f32 %v1266, 0.112945676
        %v1268 = vmul.f32 %v1250, %v1267
        %v1269 = vadd.f32 %v1268, 0.4994258
        %v1270 = vmul.f32 %v1250, %v1269
        %v1271 = vadd.f32 %v1270, 1.0
        %v1272 = vrcp.pop %v1271
        %v1273 = vmul.f32 %v1271, %v1272
        %v1274 = vsub.f32 1.0, %v1273
        %v1275 = vmul.f32 %v1272, %v1274
        %v1276 = vadd.f32 %v1272, %v1275
        %vm1277 = vweird.f32 %v1271
        %vm1278 = vweird.f32 %v1272
        %vm1279 = vmor %vm1277, %vm1278
        %v1280 = vsel %vm1279, %v1272, %v1276
        %v1281 = vand.u32 2147483647, %v1271
        %vm1282 = vcmp.eq.f32.partialorder %v1281, 8.507059e+37
        %v1283 = vand.u32 %v1271, 2147483648
        %v1284 = vor.u32 1.1754944e-38, %v1283
        %v1285 = vsel %vm1282, %v1284, %v1280
        %v1286 = vmul.f32 %v1261, %v1285
        %v1287 = vmin.f32 %v1286, 1.0
        %v1288 = vmax.f32 %v1287, -1.0
        %v1289 = vmul.f32 %v483, %v483
        %v1290 = vmin.f32 16.0, %v1289
        %v1291 = vmul.f32 %v1290, 2.1237322e-06
        %v1292 = vadd.f32 %v1291, 0.00028619796
        %v1293 = vmul.f32 %v1290, %v1292
        %v1294 = vadd.f32 %v1293, 0.0036580483
        %v1295 = vmul.f32 %v1290, %v1294
        %v1296 = vadd.f32 %v1295, 0.05243302
        %v1297 = vmul.f32 %v1290, %v1296
        %v1298 = vadd.f32 %v1297, 0.18741608
        %v1299 = vmul.f32 %v1290, %v1298
        %v1300 = vadd.f32 %v1299, 1.1283791
        %v1301 = vmul.f32 %v483, %v1300
        %v1302 = vmul.f32 %v1290, 3.8918573e-05
        %v1303 = vadd.f32 %v1302, 0.001143296
        %v1304 = vmul.f32 %v1290, %v1303
        %v1305 = vadd.f32 %v1304, 0.014752088
        %v1306 = vmul.f32 %v1290, %v1305
        %v1307 = vadd.f32 %v1306, 0.112945676
        %v1308 = vmul.f32 %v1290, %v1307
        %v1309 = vadd.f32 %v1308, 0.4994258
        %v1310 = vmul.f32 %v1290, %v1309
        %v1311 = vadd.f32 %v1310, 1.0
        %v1312 = vrcp.pop %v1311
        %v1313 = vmul.f32 %v1311, %v1312
        %v1314 = vsub.f32 1.0, %v1313
        %v1315 = vmul.f32 %v1312, %v1314
        %v1316 = vadd.f32 %v1312, %v1315
        %vm1317 = vweird.f32 %v1311
        %vm1318 = vweird.f32 %v1312
        %vm1319 = vmor %vm1317, %vm1318
        %v1320 = vsel %vm1319, %v1312, %v1316
        %v1321 = vand.u32 2147483647, %v1311
        %vm1322 = vcmp.eq.f32.partialorder %v1321, 8.507059e+37
        %v1323 = vand.u32 %v1311, 2147483648
        %v1324 = vor.u32 1.1754944e-38, %v1323
        %v1325 = vsel %vm1322, %v1324, %v1320
        %v1326 = vmul.f32 %v1301, %v1325
        %v1327 = vmin.f32 %v1326, 1.0
        %v1328 = vmax.f32 %v1327, -1.0
        %v1329 = vmul.f32 %v484, %v484
        %v1330 = vmin.f32 16.0, %v1329
        %v1331 = vmul.f32 %v1330, 2.1237322e-06
        %v1332 = vadd.f32 %v1331, 0.00028619796
        %v1333 = vmul.f32 %v1330, %v1332
        %v1334 = vadd.f32 %v1333, 0.0036580483
        %v1335 = vmul.f32 %v1330, %v1334
        %v1336 = vadd.f32 %v1335, 0.05243302
        %v1337 = vmul.f32 %v1330, %v1336
        %v1338 = vadd.f32 %v1337, 0.18741608
        %v1339 = vmul.f32 %v1330, %v1338
        %v1340 = vadd.f32 %v1339, 1.1283791
        %v1341 = vmul.f32 %v484, %v1340
        %v1342 = vmul.f32 %v1330, 3.8918573e-05
        %v1343 = vadd.f32 %v1342, 0.001143296
        %v1344 = vmul.f32 %v1330, %v1343
        %v1345 = vadd.f32 %v1344, 0.014752088
        %v1346 = vmul.f32 %v1330, %v1345
        %v1347 = vadd.f32 %v1346, 0.112945676
        %v1348 = vmul.f32 %v1330, %v1347
        %v1349 = vadd.f32 %v1348, 0.4994258
        %v1350 = vmul.f32 %v1330, %v1349
        %v1351 = vadd.f32 %v1350, 1.0
        %v1352 = vrcp.pop %v1351
        %v1353 = vmul.f32 %v1351, %v1352
        %v1354 = vsub.f32 1.0, %v1353
        %v1355 = vmul.f32 %v1352, %v1354
        %v1356 = vadd.f32 %v1352, %v1355
        %vm1357 = vweird.f32 %v1351
        %vm1358 = vweird.f32 %v1352
        %vm1359 = vmor %vm1357, %vm1358
        %v1360 = vsel %vm1359, %v1352, %v1356
        %v1361 = vand.u32 2147483647, %v1351
        %vm1362 = vcmp.eq.f32.partialorder %v1361, 8.507059e+37
        %v1363 = vand.u32 %v1351, 2147483648
        %v1364 = vor.u32 1.1754944e-38, %v1363
        %v1365 = vsel %vm1362, %v1364, %v1360
        %v1366 = vmul.f32 %v1341, %v1365
        %v1367 = vmin.f32 %v1366, 1.0
        %v1368 = vmax.f32 %v1367, -1.0
        %v1369 = vmul.f32 %v485, %v485
        %v1370 = vmin.f32 16.0, %v1369
        %v1371 = vmul.f32 %v1370, 2.1237322e-06
        %v1372 = vadd.f32 %v1371, 0.00028619796
        %v1373 = vmul.f32 %v1370, %v1372
        %v1374 = vadd.f32 %v1373, 0.0036580483
        %v1375 = vmul.f32 %v1370, %v1374
        %v1376 = vadd.f32 %v1375, 0.05243302
        %v1377 = vmul.f32 %v1370, %v1376
        %v1378 = vadd.f32 %v1377, 0.18741608
        %v1379 = vmul.f32 %v1370, %v1378
        %v1380 = vadd.f32 %v1379, 1.1283791
        %v1381 = vmul.f32 %v485, %v1380
        %v1382 = vmul.f32 %v1370, 3.8918573e-05
        %v1383 = vadd.f32 %v1382, 0.001143296
        %v1384 = vmul.f32 %v1370, %v1383
        %v1385 = vadd.f32 %v1384, 0.014752088
        %v1386 = vmul.f32 %v1370, %v1385
        %v1387 = vadd.f32 %v1386, 0.112945676
        %v1388 = vmul.f32 %v1370, %v1387
        %v1389 = vadd.f32 %v1388, 0.4994258
        %v1390 = vmul.f32 %v1370, %v1389
        %v1391 = vadd.f32 %v1390, 1.0
        %v1392 = vrcp.pop %v1391
        %v1393 = vmul.f32 %v1391, %v1392
        %v1394 = vsub.f32 1.0, %v1393
        %v1395 = vmul.f32 %v1392, %v1394
        %v1396 = vadd.f32 %v1392, %v1395
        %vm1397 = vweird.f32 %v1391
        %vm1398 = vweird.f32 %v1392
        %vm1399 = vmor %vm1397, %vm1398
        %v1400 = vsel %vm1399, %v1392, %v1396
        %v1401 = vand.u32 2147483647, %v1391
        %vm1402 = vcmp.eq.f32.partialorder %v1401, 8.507059e+37
        %v1403 = vand.u32 %v1391, 2147483648
        %v1404 = vor.u32 1.1754944e-38, %v1403
        %v1405 = vsel %vm1402, %v1404, %v1400
        %v1406 = vmul.f32 %v1381, %v1405
        %v1407 = vmin.f32 %v1406, 1.0
        %v1408 = vmax.f32 %v1407, -1.0
        %v1409 = vmul.f32 %v486, %v486
        %v1410 = vmin.f32 16.0, %v1409
        %v1411 = vmul.f32 %v1410, 2.1237322e-06
        %v1412 = vadd.f32 %v1411, 0.00028619796
        %v1413 = vmul.f32 %v1410, %v1412
        %v1414 = vadd.f32 %v1413, 0.0036580483
        %v1415 = vmul.f32 %v1410, %v1414
        %v1416 = vadd.f32 %v1415, 0.05243302
        %v1417 = vmul.f32 %v1410, %v1416
        %v1418 = vadd.f32 %v1417, 0.18741608
        %v1419 = vmul.f32 %v1410, %v1418
        %v1420 = vadd.f32 %v1419, 1.1283791
        %v1421 = vmul.f32 %v486, %v1420
        %v1422 = vmul.f32 %v1410, 3.8918573e-05
        %v1423 = vadd.f32 %v1422, 0.001143296
        %v1424 = vmul.f32 %v1410, %v1423
        %v1425 = vadd.f32 %v1424, 0.014752088
        %v1426 = vmul.f32 %v1410, %v1425
        %v1427 = vadd.f32 %v1426, 0.112945676
        %v1428 = vmul.f32 %v1410, %v1427
        %v1429 = vadd.f32 %v1428, 0.4994258
        %v1430 = vmul.f32 %v1410, %v1429
        %v1431 = vadd.f32 %v1430, 1.0
        %v1432 = vrcp.pop %v1431
        %v1433 = vmul.f32 %v1431, %v1432
        %v1434 = vsub.f32 1.0, %v1433
        %v1435 = vmul.f32 %v1432, %v1434
        %v1436 = vadd.f32 %v1432, %v1435
        %vm1437 = vweird.f32 %v1431
        %vm1438 = vweird.f32 %v1432
        %vm1439 = vmor %vm1437, %vm1438
        %v1440 = vsel %vm1439, %v1432, %v1436
        %v1441 = vand.u32 2147483647, %v1431
        %vm1442 = vcmp.eq.f32.partialorder %v1441, 8.507059e+37
        %v1443 = vand.u32 %v1431, 2147483648
        %v1444 = vor.u32 1.1754944e-38, %v1443
        %v1445 = vsel %vm1442, %v1444, %v1440
        %v1446 = vmul.f32 %v1421, %v1445
        %v1447 = vmin.f32 %v1446, 1.0
        %v1448 = vmax.f32 %v1447, -1.0
        %v1449 = vmul.f32 %v487, %v487
        %v1450 = vmin.f32 16.0, %v1449
        %v1451 = vmul.f32 %v1450, 2.1237322e-06
        %v1452 = vadd.f32 %v1451, 0.00028619796
        %v1453 = vmul.f32 %v1450, %v1452
        %v1454 = vadd.f32 %v1453, 0.0036580483
        %v1455 = vmul.f32 %v1450, %v1454
        %v1456 = vadd.f32 %v1455, 0.05243302
        %v1457 = vmul.f32 %v1450, %v1456
        %v1458 = vadd.f32 %v1457, 0.18741608
        %v1459 = vmul.f32 %v1450, %v1458
        %v1460 = vadd.f32 %v1459, 1.1283791
        %v1461 = vmul.f32 %v487, %v1460
        %v1462 = vmul.f32 %v1450, 3.8918573e-05
        %v1463 = vadd.f32 %v1462, 0.001143296
        %v1464 = vmul.f32 %v1450, %v1463
        %v1465 = vadd.f32 %v1464, 0.014752088
        %v1466 = vmul.f32 %v1450, %v1465
        %v1467 = vadd.f32 %v1466, 0.112945676
        %v1468 = vmul.f32 %v1450, %v1467
        %v1469 = vadd.f32 %v1468, 0.4994258
        %v1470 = vmul.f32 %v1450, %v1469
        %v1471 = vadd.f32 %v1470, 1.0
        %v1472 = vrcp.pop %v1471
        %v1473 = vmul.f32 %v1471, %v1472
        %v1474 = vsub.f32 1.0, %v1473
        %v1475 = vmul.f32 %v1472, %v1474
        %v1476 = vadd.f32 %v1472, %v1475
        %vm1477 = vweird.f32 %v1471
        %vm1478 = vweird.f32 %v1472
        %vm1479 = vmor %vm1477, %vm1478
        %v1480 = vsel %vm1479, %v1472, %v1476
        %v1481 = vand.u32 2147483647, %v1471
        %vm1482 = vcmp.eq.f32.partialorder %v1481, 8.507059e+37
        %v1483 = vand.u32 %v1471, 2147483648
        %v1484 = vor.u32 1.1754944e-38, %v1483
        %v1485 = vsel %vm1482, %v1484, %v1480
        %v1486 = vmul.f32 %v1461, %v1485
        %v1487 = vmin.f32 %v1486, 1.0
        %v1488 = vmax.f32 %v1487, -1.0
        %v1489 = vmul.f32 %v488, %v488
        %v1490 = vmin.f32 16.0, %v1489
        %v1491 = vmul.f32 %v1490, 2.1237322e-06
        %v1492 = vadd.f32 %v1491, 0.00028619796
        %v1493 = vmul.f32 %v1490, %v1492
        %v1494 = vadd.f32 %v1493, 0.0036580483
        %v1495 = vmul.f32 %v1490, %v1494
        %v1496 = vadd.f32 %v1495, 0.05243302
        %v1497 = vmul.f32 %v1490, %v1496
        %v1498 = vadd.f32 %v1497, 0.18741608
        %v1499 = vmul.f32 %v1490, %v1498
        %v1500 = vadd.f32 %v1499, 1.1283791
        %v1501 = vmul.f32 %v488, %v1500
        %v1502 = vmul.f32 %v1490, 3.8918573e-05
        %v1503 = vadd.f32 %v1502, 0.001143296
        %v1504 = vmul.f32 %v1490, %v1503
        %v1505 = vadd.f32 %v1504, 0.014752088
        %v1506 = vmul.f32 %v1490, %v1505
        %v1507 = vadd.f32 %v1506, 0.112945676
        %v1508 = vmul.f32 %v1490, %v1507
        %v1509 = vadd.f32 %v1508, 0.4994258
        %v1510 = vmul.f32 %v1490, %v1509
        %v1511 = vadd.f32 %v1510, 1.0
        %v1512 = vrcp.pop %v1511
        %v1513 = vmul.f32 %v1511, %v1512
        %v1514 = vsub.f32 1.0, %v1513
        %v1515 = vmul.f32 %v1512, %v1514
        %v1516 = vadd.f32 %v1512, %v1515
        %vm1517 = vweird.f32 %v1511
        %vm1518 = vweird.f32 %v1512
        %vm1519 = vmor %vm1517, %vm1518
        %v1520 = vsel %vm1519, %v1512, %v1516
        %v1521 = vand.u32 2147483647, %v1511
        %vm1522 = vcmp.eq.f32.partialorder %v1521, 8.507059e+37
        %v1523 = vand.u32 %v1511, 2147483648
        %v1524 = vor.u32 1.1754944e-38, %v1523
        %v1525 = vsel %vm1522, %v1524, %v1520
        %v1526 = vmul.f32 %v1501, %v1525
        %v1527 = vmin.f32 %v1526, 1.0
        %v1528 = vmax.f32 %v1527, -1.0
        %v1529 = vadd.f32 %v528, 1.0
        %v1530 = vadd.f32 %v568, 1.0
        %v1531 = vadd.f32 %v608, 1.0
        %v1532 = vadd.f32 %v648, 1.0
        %v1533 = vadd.f32 %v688, 1.0
        %v1534 = vadd.f32 %v728, 1.0
        %v1535 = vadd.f32 %v768, 1.0
        %v1536 = vadd.f32 %v808, 1.0
        %v1537 = vadd.f32 %v848, 1.0
        %v1538 = vadd.f32 %v888, 1.0
        %v1539 = vadd.f32 %v928, 1.0
        %v1540 = vadd.f32 %v968, 1.0
        %v1541 = vadd.f32 %v1008, 1.0
        %v1542 = vadd.f32 %v1048, 1.0
        %v1543 = vadd.f32 %v1088, 1.0
        %v1544 = vadd.f32 %v1128, 1.0
        %v1545 = vadd.f32 %v1168, 1.0
        %v1546 = vadd.f32 %v1208, 1.0
        %v1547 = vadd.f32 %v1248, 1.0
        %v1548 = vadd.f32 %v1288, 1.0
        %v1549 = vadd.f32 %v1328, 1.0
        %v1550 = vadd.f32 %v1368, 1.0
        %v1551 = vadd.f32 %v1408, 1.0
        %v1552 = vadd.f32 %v1448, 1.0
        %v1553 = vadd.f32 %v1488, 1.0
        %v1554 = vadd.f32 %v1528, 1.0
        %v1555 = vmul.f32 %v437, %v1529
        %v1556 = vmul.f32 %v438, %v1530
        %v1557 = vmul.f32 %v439, %v1531
        %v1558 = vmul.f32 %v440, %v1532
        %v1559 = vmul.f32 %v441, %v1533
        %v1560 = vmul.f32 %v442, %v1534
        %v1561 = vmul.f32 %v443, %v1535
        %v1562 = vmul.f32 %v444, %v1536
        %v1563 = vmul.f32 %v445, %v1537
        %v1564 = vmul.f32 %v446, %v1538
        %v1565 = vmul.f32 %v447, %v1539
        %v1566 = vmul.f32 %v448, %v1540
        %v1567 = vmul.f32 %v449, %v1541
        %v1568 = vmul.f32 %v450, %v1542
        %v1569 = vmul.f32 %v451, %v1543
        %v1570 = vmul.f32 %v452, %v1544
        %v1571 = vmul.f32 %v453, %v1545
        %v1572 = vmul.f32 %v454, %v1546
        %v1573 = vmul.f32 %v455, %v1547
        %v1574 = vmul.f32 %v456, %v1548
        %v1575 = vmul.f32 %v457, %v1549
        %v1576 = vmul.f32 %v458, %v1550
        %v1577 = vmul.f32 %v459, %v1551
        %v1578 = vmul.f32 %v460, %v1552
        %v1579 = vmul.f32 %v461, %v1553
        %v1580 = vmul.f32 %v462, %v1554
        %v1581 = vunpack.c.l.bf16 %v192
        %v1582 = vunpack.c.l.bf16 %v193
        %v1583 = vunpack.c.l.bf16 %v194
        %v1584 = vunpack.c.l.bf16 %v195
        %v1585 = vunpack.c.l.bf16 %v196
        %v1586 = vunpack.c.l.bf16 %v197
        %v1587 = vunpack.c.l.bf16 %v198
        %v1588 = vunpack.c.l.bf16 %v199
        %v1589 = vunpack.c.l.bf16 %v200
        %v1590 = vunpack.c.l.bf16 %v201
        %v1591 = vunpack.c.l.bf16 %v202
        %v1592 = vunpack.c.l.bf16 %v203
        %v1593 = vunpack.c.l.bf16 %v204
        %v1594 = vunpack.c.l.bf16 %v205
        %v1595 = vunpack.c.l.bf16 %v206
        %v1596 = vunpack.c.l.bf16 %v207
        %v1597 = vunpack.c.l.bf16 %v208
        %v1598 = vunpack.c.l.bf16 %v209
        %v1599 = vunpack.c.l.bf16 %v210
        %v1600 = vunpack.c.l.bf16 %v211
        %v1601 = vunpack.c.l.bf16 %v212
        %v1602 = vunpack.c.l.bf16 %v213
        %v1603 = vunpack.c.l.bf16 %v214
        %v1604 = vunpack.c.l.bf16 %v215
        %v1605 = vunpack.c.l.bf16 %v216
        %v1606 = vunpack.c.l.bf16 %v217
        %v1607 = vadd.f32 %v1555, %v1581
        %v1608 = vadd.f32 %v1556, %v1582
        %v1609 = vadd.f32 %v1557, %v1583
        %v1610 = vadd.f32 %v1558, %v1584
        %v1611 = vadd.f32 %v1559, %v1585
        %v1612 = vadd.f32 %v1560, %v1586
        %v1613 = vadd.f32 %v1561, %v1587
        %v1614 = vadd.f32 %v1562, %v1588
        %v1615 = vadd.f32 %v1563, %v1589
        %v1616 = vadd.f32 %v1564, %v1590
        %v1617 = vadd.f32 %v1565, %v1591
        %v1618 = vadd.f32 %v1566, %v1592
        %v1619 = vadd.f32 %v1567, %v1593
        %v1620 = vadd.f32 %v1568, %v1594
        %v1621 = vadd.f32 %v1569, %v1595
        %v1622 = vadd.f32 %v1570, %v1596
        %v1623 = vadd.f32 %v1571, %v1597
        %v1624 = vadd.f32 %v1572, %v1598
        %v1625 = vadd.f32 %v1573, %v1599
        %v1626 = vadd.f32 %v1574, %v1600
        %v1627 = vadd.f32 %v1575, %v1601
        %v1628 = vadd.f32 %v1576, %v1602
        %v1629 = vadd.f32 %v1577, %v1603
        %v1630 = vadd.f32 %v1578, %v1604
        %v1631 = vadd.f32 %v1579, %v1605
        %v1632 = vadd.f32 %v1580, %v1606
        %v1633 = vpack.c.bf16 %v1607, %v1607
        %v1634 = vpack.c.bf16 %v1608, %v1608
        %v1635 = vpack.c.bf16 %v1609, %v1609
        %v1636 = vpack.c.bf16 %v1610, %v1610
        %v1637 = vpack.c.bf16 %v1611, %v1611
        %v1638 = vpack.c.bf16 %v1612, %v1612
        %v1639 = vpack.c.bf16 %v1613, %v1613
        %v1640 = vpack.c.bf16 %v1614, %v1614
        %v1641 = vpack.c.bf16 %v1615, %v1615
        %v1642 = vpack.c.bf16 %v1616, %v1616
        %v1643 = vpack.c.bf16 %v1617, %v1617
        %v1644 = vpack.c.bf16 %v1618, %v1618
        %v1645 = vpack.c.bf16 %v1619, %v1619
        %v1646 = vpack.c.bf16 %v1620, %v1620
        %v1647 = vpack.c.bf16 %v1621, %v1621
        %v1648 = vpack.c.bf16 %v1622, %v1622
        %v1649 = vpack.c.bf16 %v1623, %v1623
        %v1650 = vpack.c.bf16 %v1624, %v1624
        %v1651 = vpack.c.bf16 %v1625, %v1625
        %v1652 = vpack.c.bf16 %v1626, %v1626
        %v1653 = vpack.c.bf16 %v1627, %v1627
        %v1654 = vpack.c.bf16 %v1628, %v1628
        %v1655 = vpack.c.bf16 %v1629, %v1629
        %v1656 = vpack.c.bf16 %v1630, %v1630
        %v1657 = vpack.c.bf16 %v1631, %v1631
        %v1658 = vpack.c.bf16 %v1632, %v1632
        %1659 = vst [vmem:[%s172] sm:$0xf] %v1633
        %1660 = vst [vmem:[%s172 + $0x4] sm:$0xf] %v1634
        %1661 = vst [vmem:[%s172 + $0x8] sm:$0xf] %v1635
        %1662 = vst [vmem:[%s172 + $0xc] sm:$0xf] %v1636
        %1663 = vst [vmem:[%s172 + $0x10] sm:$0xf] %v1637
        %1664 = vst [vmem:[%s172 + $0x14] sm:$0xf] %v1638
        %1665 = vst [vmem:[%s172 + $0x18] sm:$0xf] %v1639
        %1666 = vst [vmem:[%s172 + $0x1c] sm:$0xf] %v1640
        %1667 = vst [vmem:[%s172 + $0x20] sm:$0xf] %v1641
        %1668 = vst [vmem:[%s172 + $0x24] sm:$0xf] %v1642
        %1669 = vst [vmem:[%s172 + $0x28] sm:$0xf] %v1643
        %1670 = vst [vmem:[%s172 + $0x2c] sm:$0xf] %v1644
        %1671 = vst [vmem:[%s172 + $0x30] sm:$0xf] %v1645
        %1672 = vst [vmem:[%s172 + $0x34] sm:$0xf] %v1646
        %1673 = vst [vmem:[%s172 + $0x38] sm:$0xf] %v1647
        %1674 = vst [vmem:[%s172 + $0x3c] sm:$0xf] %v1648
        %1675 = vst [vmem:[%s172 + $0x40] sm:$0xf] %v1649
        %1676 = vst [vmem:[%s172 + $0x44] sm:$0xf] %v1650
        %1677 = vst [vmem:[%s172 + $0x48] sm:$0xf] %v1651
        %1678 = vst [vmem:[%s172 + $0x4c] sm:$0xf] %v1652
        %1679 = vst [vmem:[%s172 + $0x50] sm:$0xf] %v1653
        %1680 = vst [vmem:[%s172 + $0x54] sm:$0xf] %v1654
        %1681 = vst [vmem:[%s172 + $0x58] sm:$0xf] %v1655
        %1682 = vst [vmem:[%s172 + $0x5c] sm:$0xf] %v1656
        %1683 = vst [vmem:[%s172 + $0x60] sm:$0xf] %v1657
        %1684 = vst [vmem:[%s172 + $0x64] sm:$0xf] %v1658
        %s1685 = sand.u32 %s90, 1
        %s1686 = sand.u32 %s90, 1
        %s1687 = smul.addr %s1686, 104
        %s1688 = scalar_lea.vmem [#allocation2], %s1687
        // Predicated region
        $region33: #{residual_forward_nhwc.1} parent=31 // pred_check
          %p1689 = pneg %p100
        $region34: #{residual_forward_nhwc.1} parent=31 // pred_check_branch
          %1691 = sbr.rel (%p1689) target = $region36
        $region35: #{residual_forward_nhwc.1} parent=31 // pred_region
          %s1692 = smul.u32 26, %s14
          %s1693 = ssub.s32 49, %s1692
          %p1694 = scmp.lt.s32.totalorder %s1693, 26
          %s1695 = scalar_select %p1694, %s1693, 26
          %s1696 = smul.u32 4, %s1695
          %p1697 = scmp.ne.s32.totalorder 0, %s1696
          %s1698 = smul.addr %s1692, 4
          %s1699 = scalar_lea.vmem %s3, %s1698
          // Predicated region
          $region37: #{residual_forward_nhwc.1} parent=35 // pred_check
            %p1700 = pneg %p1697
          $region38: #{residual_forward_nhwc.1} parent=35 // pred_check_branch
            %1702 = sbr.rel (%p1700) target = $region40
          $region39: #{residual_forward_nhwc.1} parent=35 // pred_region
            // Predicated region
            $region41: #{residual_forward_nhwc.1} parent=39 // pred_check
              _
            $region42: #{residual_forward_nhwc.1} parent=39 // pred_check_branch
              %1704 = sbr.rel target = $region44
            $region43: #{residual_forward_nhwc.1} parent=39 // pred_region
              // Predicated region
              $region63: #{residual_forward_nhwc.1} parent=43 // pred_check
                _
              $region64: #{residual_forward_nhwc.1} parent=43 // pred_check_branch
                %1805 = sbr.rel (0) target = $region66
              $region65: #{residual_forward_nhwc.1} parent=43 // pred_region
                %s1807 = ssub.s32 16, 1
                %s1808 = sdiv.u32.pop %s1695, 26
                %s1809 = srem.u32.pop %s1695, 26
                // While loop
                $region67: #{residual_forward_nhwc.1} parent=65 // loop_pre_header
                  _
                $region68: #{residual_forward_nhwc.1} parent=65 // loop_header
                  %s1811 = sphi 0, %s1813
                  %p1812 = scmp.ge.s32.totalorder %s1811, %s1808
                  %s1816 = sphi 0, %s1873
                  %s1817 = sphi %s1688, %s1876
                  %s1818 = sphi %s1699, %s1877
                $region69: #{residual_forward_nhwc.1} parent=65 // loop_header_branch
                  %1815 = sbr.rel (%p1812) target = $region73
                $region70: #{residual_forward_nhwc.1} parent=65 // loop_body
                  %v1819 = vld [vmem:[%s1817] sm:%s1807]
                  %1820 = vst [vmem:[%s1818] sm:%s1807] %v1819
                  %v1821 = vld [vmem:[%s1817 + $0x4] sm:%s1807]
                  %1822 = vst [vmem:[%s1818 + $0x4] sm:%s1807] %v1821
                  %v1823 = vld [vmem:[%s1817 + $0x8] sm:%s1807]
                  %1824 = vst [vmem:[%s1818 + $0x8] sm:%s1807] %v1823
                  %v1825 = vld [vmem:[%s1817 + $0xc] sm:%s1807]
                  %1826 = vst [vmem:[%s1818 + $0xc] sm:%s1807] %v1825
                  %v1827 = vld [vmem:[%s1817 + $0x10] sm:%s1807]
                  %1828 = vst [vmem:[%s1818 + $0x10] sm:%s1807] %v1827
                  %v1829 = vld [vmem:[%s1817 + $0x14] sm:%s1807]
                  %1830 = vst [vmem:[%s1818 + $0x14] sm:%s1807] %v1829
                  %v1831 = vld [vmem:[%s1817 + $0x18] sm:%s1807]
                  %1832 = vst [vmem:[%s1818 + $0x18] sm:%s1807] %v1831
                  %v1833 = vld [vmem:[%s1817 + $0x1c] sm:%s1807]
                  %1834 = vst [vmem:[%s1818 + $0x1c] sm:%s1807] %v1833
                  %v1835 = vld [vmem:[%s1817 + $0x20] sm:%s1807]
                  %1836 = vst [vmem:[%s1818 + $0x20] sm:%s1807] %v1835
                  %v1837 = vld [vmem:[%s1817 + $0x24] sm:%s1807]
                  %1838 = vst [vmem:[%s1818 + $0x24] sm:%s1807] %v1837
                  %v1839 = vld [vmem:[%s1817 + $0x28] sm:%s1807]
                  %1840 = vst [vmem:[%s1818 + $0x28] sm:%s1807] %v1839
                  %v1841 = vld [vmem:[%s1817 + $0x2c] sm:%s1807]
                  %1842 = vst [vmem:[%s1818 + $0x2c] sm:%s1807] %v1841
                  %v1843 = vld [vmem:[%s1817 + $0x30] sm:%s1807]
                  %1844 = vst [vmem:[%s1818 + $0x30] sm:%s1807] %v1843
                  %v1845 = vld [vmem:[%s1817 + $0x34] sm:%s1807]
                  %1846 = vst [vmem:[%s1818 + $0x34] sm:%s1807] %v1845
                  %v1847 = vld [vmem:[%s1817 + $0x38] sm:%s1807]
                  %1848 = vst [vmem:[%s1818 + $0x38] sm:%s1807] %v1847
                  %v1849 = vld [vmem:[%s1817 + $0x3c] sm:%s1807]
                  %1850 = vst [vmem:[%s1818 + $0x3c] sm:%s1807] %v1849
                  %v1851 = vld [vmem:[%s1817 + $0x40] sm:%s1807]
                  %1852 = vst [vmem:[%s1818 + $0x40] sm:%s1807] %v1851
                  %v1853 = vld [vmem:[%s1817 + $0x44] sm:%s1807]
                  %1854 = vst [vmem:[%s1818 + $0x44] sm:%s1807] %v1853
                  %v1855 = vld [vmem:[%s1817 + $0x48] sm:%s1807]
                  %1856 = vst [vmem:[%s1818 + $0x48] sm:%s1807] %v1855
                  %v1857 = vld [vmem:[%s1817 + $0x4c] sm:%s1807]
                  %1858 = vst [vmem:[%s1818 + $0x4c] sm:%s1807] %v1857
                  %v1859 = vld [vmem:[%s1817 + $0x50] sm:%s1807]
                  %1860 = vst [vmem:[%s1818 + $0x50] sm:%s1807] %v1859
                  %v1861 = vld [vmem:[%s1817 + $0x54] sm:%s1807]
                  %1862 = vst [vmem:[%s1818 + $0x54] sm:%s1807] %v1861
                  %v1863 = vld [vmem:[%s1817 + $0x58] sm:%s1807]
                  %1864 = vst [vmem:[%s1818 + $0x58] sm:%s1807] %v1863
                  %v1865 = vld [vmem:[%s1817 + $0x5c] sm:%s1807]
                  %1866 = vst [vmem:[%s1818 + $0x5c] sm:%s1807] %v1865
                  %v1867 = vld [vmem:[%s1817 + $0x60] sm:%s1807]
                  %1868 = vst [vmem:[%s1818 + $0x60] sm:%s1807] %v1867
                  %v1869 = vld [vmem:[%s1817 + $0x64] sm:%s1807]
                  %1870 = vst [vmem:[%s1818 + $0x64] sm:%s1807] %v1869
                  %s1871 = sadd.s32 1, %s1816
                  %p1872 = scmp.ge.s32.totalorder %s1871, %s1808
                  %s1873 = scalar_select %p1872, 0, %s1871
                  %s1874 = smul.u32 %s1873, 104
                  %s1875 = smul.u32 %s1873, 104
                  %s1876 = scalar_lea.vmem %s1688, %s1874 [#allocation2]
                  %s1877 = scalar_lea.vmem %s1699, %s1875
                $region71: #{residual_forward_nhwc.1} parent=65 // loop_footer
                  %s1813 = sadd.s32 %s1811, 1
                $region72: #{residual_forward_nhwc.1} parent=65 // loop_footer_branch
                  %1810 = sbr.rel target = $region68
                $region73: #{residual_forward_nhwc.1} parent=65 // loop_exit
                  _
                %s1878 = sdiv.u32.pop %s1695, 26
                %s1879 = srem.u32.pop %s1695, 26
                %s1880 = smul.u32 %s1878, 26
                %s1881 = smul.u32 4, %s1880
                %s1882 = scalar_lea.vmem %s1688, %s1881 [#allocation2]
                %s1883 = smul.u32 4, %s1880
                %s1884 = scalar_lea.vmem %s1699, %s1883
                // While loop
                $region74: #{residual_forward_nhwc.1} parent=65 // loop_pre_header
                  _
                $region75: #{residual_forward_nhwc.1} parent=65 // loop_header
                  %s1886 = sphi 0, %s1888
                  %p1887 = scmp.ge.s32.totalorder %s1886, %s1879
                  %s1891 = sphi 0, %s1898
                  %s1892 = sphi %s1882, %s1901
                  %s1893 = sphi %s1884, %s1902
                $region76: #{residual_forward_nhwc.1} parent=65 // loop_header_branch
                  %1890 = sbr.rel (%p1887) target = $region80
                $region77: #{residual_forward_nhwc.1} parent=65 // loop_body
                  %v1894 = vld [vmem:[%s1892] sm:%s1807]
                  %1895 = vst [vmem:[%s1893] sm:%s1807] %v1894
                  %s1896 = sadd.s32 1, %s1891
                  %p1897 = scmp.ge.s32.totalorder %s1896, %s1879
                  %s1898 = scalar_select %p1897, 0, %s1896
                  %s1899 = smul.u32 %s1898, 4
                  %s1900 = smul.u32 %s1898, 4
                  %s1901 = scalar_lea.vmem %s1882, %s1899 [#allocation2]
                  %s1902 = scalar_lea.vmem %s1884, %s1900
                $region78: #{residual_forward_nhwc.1} parent=65 // loop_footer
                  %s1888 = sadd.s32 %s1886, 1
                $region79: #{residual_forward_nhwc.1} parent=65 // loop_footer_branch
                  %1885 = sbr.rel target = $region75
                $region80: #{residual_forward_nhwc.1} parent=65 // loop_exit
                  _
              $region66: #{residual_forward_nhwc.1} parent=43 // pred_fallthru
                _
            $region44: #{residual_forward_nhwc.1} parent=39 // pred_fallthru
              _
            // Predicated region
            $region45: #{residual_forward_nhwc.1} parent=39 // pred_check
              _
            $region46: #{residual_forward_nhwc.1} parent=39 // pred_check_branch
              %1706 = sbr.rel (0) target = $region48
            $region47: #{residual_forward_nhwc.1} parent=39 // pred_region
              %s1708 = ssub.s32 16, 1
              %s1709 = sdiv.u32.pop %s1695, 26
              %s1710 = srem.u32.pop %s1695, 26
              // While loop
              $region49: #{residual_forward_nhwc.1} parent=47 // loop_pre_header
                _
              $region50: #{residual_forward_nhwc.1} parent=47 // loop_header
                %s1712 = sphi 0, %s1714
                %p1713 = scmp.ge.s32.totalorder %s1712, %s1709
                %s1717 = sphi 0, %s1774
                %s1718 = sphi %s1688, %s1777
                %s1719 = sphi %s1699, %s1778
              $region51: #{residual_forward_nhwc.1} parent=47 // loop_header_branch
                %1716 = sbr.rel (%p1713) target = $region55
              $region52: #{residual_forward_nhwc.1} parent=47 // loop_body
                %v1720 = vld [vmem:[%s1718] sm:%s1708]
                %1721 = vst [vmem:[%s1719] sm:%s1708] %v1720
                %v1722 = vld [vmem:[%s1718 + $0x4] sm:%s1708]
                %1723 = vst [vmem:[%s1719 + $0x4] sm:%s1708] %v1722
                %v1724 = vld [vmem:[%s1718 + $0x8] sm:%s1708]
                %1725 = vst [vmem:[%s1719 + $0x8] sm:%s1708] %v1724
                %v1726 = vld [vmem:[%s1718 + $0xc] sm:%s1708]
                %1727 = vst [vmem:[%s1719 + $0xc] sm:%s1708] %v1726
                %v1728 = vld [vmem:[%s1718 + $0x10] sm:%s1708]
                %1729 = vst [vmem:[%s1719 + $0x10] sm:%s1708] %v1728
                %v1730 = vld [vmem:[%s1718 + $0x14] sm:%s1708]
                %1731 = vst [vmem:[%s1719 + $0x14] sm:%s1708] %v1730
                %v1732 = vld [vmem:[%s1718 + $0x18] sm:%s1708]
                %1733 = vst [vmem:[%s1719 + $0x18] sm:%s1708] %v1732
                %v1734 = vld [vmem:[%s1718 + $0x1c] sm:%s1708]
                %1735 = vst [vmem:[%s1719 + $0x1c] sm:%s1708] %v1734
                %v1736 = vld [vmem:[%s1718 + $0x20] sm:%s1708]
                %1737 = vst [vmem:[%s1719 + $0x20] sm:%s1708] %v1736
                %v1738 = vld [vmem:[%s1718 + $0x24] sm:%s1708]
                %1739 = vst [vmem:[%s1719 + $0x24] sm:%s1708] %v1738
                %v1740 = vld [vmem:[%s1718 + $0x28] sm:%s1708]
                %1741 = vst [vmem:[%s1719 + $0x28] sm:%s1708] %v1740
                %v1742 = vld [vmem:[%s1718 + $0x2c] sm:%s1708]
                %1743 = vst [vmem:[%s1719 + $0x2c] sm:%s1708] %v1742
                %v1744 = vld [vmem:[%s1718 + $0x30] sm:%s1708]
                %1745 = vst [vmem:[%s1719 + $0x30] sm:%s1708] %v1744
                %v1746 = vld [vmem:[%s1718 + $0x34] sm:%s1708]
                %1747 = vst [vmem:[%s1719 + $0x34] sm:%s1708] %v1746
                %v1748 = vld [vmem:[%s1718 + $0x38] sm:%s1708]
                %1749 = vst [vmem:[%s1719 + $0x38] sm:%s1708] %v1748
                %v1750 = vld [vmem:[%s1718 + $0x3c] sm:%s1708]
                %1751 = vst [vmem:[%s1719 + $0x3c] sm:%s1708] %v1750
                %v1752 = vld [vmem:[%s1718 + $0x40] sm:%s1708]
                %1753 = vst [vmem:[%s1719 + $0x40] sm:%s1708] %v1752
                %v1754 = vld [vmem:[%s1718 + $0x44] sm:%s1708]
                %1755 = vst [vmem:[%s1719 + $0x44] sm:%s1708] %v1754
                %v1756 = vld [vmem:[%s1718 + $0x48] sm:%s1708]
                %1757 = vst [vmem:[%s1719 + $0x48] sm:%s1708] %v1756
                %v1758 = vld [vmem:[%s1718 + $0x4c] sm:%s1708]
                %1759 = vst [vmem:[%s1719 + $0x4c] sm:%s1708] %v1758
                %v1760 = vld [vmem:[%s1718 + $0x50] sm:%s1708]
                %1761 = vst [vmem:[%s1719 + $0x50] sm:%s1708] %v1760
                %v1762 = vld [vmem:[%s1718 + $0x54] sm:%s1708]
                %1763 = vst [vmem:[%s1719 + $0x54] sm:%s1708] %v1762
                %v1764 = vld [vmem:[%s1718 + $0x58] sm:%s1708]
                %1765 = vst [vmem:[%s1719 + $0x58] sm:%s1708] %v1764
                %v1766 = vld [vmem:[%s1718 + $0x5c] sm:%s1708]
                %1767 = vst [vmem:[%s1719 + $0x5c] sm:%s1708] %v1766
                %v1768 = vld [vmem:[%s1718 + $0x60] sm:%s1708]
                %1769 = vst [vmem:[%s1719 + $0x60] sm:%s1708] %v1768
                %v1770 = vld [vmem:[%s1718 + $0x64] sm:%s1708]
                %1771 = vst [vmem:[%s1719 + $0x64] sm:%s1708] %v1770
                %s1772 = sadd.s32 1, %s1717
                %p1773 = scmp.ge.s32.totalorder %s1772, %s1709
                %s1774 = scalar_select %p1773, 0, %s1772
                %s1775 = smul.u32 %s1774, 104
                %s1776 = smul.u32 %s1774, 104
                %s1777 = scalar_lea.vmem %s1688, %s1775 [#allocation2]
                %s1778 = scalar_lea.vmem %s1699, %s1776
              $region53: #{residual_forward_nhwc.1} parent=47 // loop_footer
                %s1714 = sadd.s32 %s1712, 1
              $region54: #{residual_forward_nhwc.1} parent=47 // loop_footer_branch
                %1711 = sbr.rel target = $region50
              $region55: #{residual_forward_nhwc.1} parent=47 // loop_exit
                _
              %s1779 = sdiv.u32.pop %s1695, 26
              %s1780 = srem.u32.pop %s1695, 26
              %s1781 = smul.u32 %s1779, 26
              %s1782 = smul.u32 4, %s1781
              %s1783 = scalar_lea.vmem %s1688, %s1782 [#allocation2]
              %s1784 = smul.u32 4, %s1781
              %s1785 = scalar_lea.vmem %s1699, %s1784
              // While loop
              $region56: #{residual_forward_nhwc.1} parent=47 // loop_pre_header
                _
              $region57: #{residual_forward_nhwc.1} parent=47 // loop_header
                %s1787 = sphi 0, %s1789
                %p1788 = scmp.ge.s32.totalorder %s1787, %s1780
                %s1792 = sphi 0, %s1799
                %s1793 = sphi %s1783, %s1802
                %s1794 = sphi %s1785, %s1803
              $region58: #{residual_forward_nhwc.1} parent=47 // loop_header_branch
                %1791 = sbr.rel (%p1788) target = $region62
              $region59: #{residual_forward_nhwc.1} parent=47 // loop_body
                %v1795 = vld [vmem:[%s1793] sm:%s1708]
                %1796 = vst [vmem:[%s1794] sm:%s1708] %v1795
                %s1797 = sadd.s32 1, %s1792
                %p1798 = scmp.ge.s32.totalorder %s1797, %s1780
                %s1799 = scalar_select %p1798, 0, %s1797
                %s1800 = smul.u32 %s1799, 4
                %s1801 = smul.u32 %s1799, 4
                %s1802 = scalar_lea.vmem %s1783, %s1800 [#allocation2]
                %s1803 = scalar_lea.vmem %s1785, %s1801
              $region60: #{residual_forward_nhwc.1} parent=47 // loop_footer
                %s1789 = sadd.s32 %s1787, 1
              $region61: #{residual_forward_nhwc.1} parent=47 // loop_footer_branch
                %1786 = sbr.rel target = $region57
              $region62: #{residual_forward_nhwc.1} parent=47 // loop_exit
                _
            $region48: #{residual_forward_nhwc.1} parent=39 // pred_fallthru
              _
          $region40: #{residual_forward_nhwc.1} parent=35 // pred_fallthru
            _
          %1903 = vnop
        $region36: #{residual_forward_nhwc.1} parent=31 // pred_fallthru
          _
      $region32: #{residual_forward_nhwc.1} parent=5 // pred_fallthru
        _
      %p1904 = scmp.le.s32.totalorder 2, %s9
      // Predicated region
      $region81: #{residual_forward_nhwc.1} parent=5 // pred_check
        %p1905 = pneg %p1904
      $region82: #{residual_forward_nhwc.1} parent=5 // pred_check_branch
        %1907 = sbr.rel (%p1905) target = $region84
      $region83: #{residual_forward_nhwc.1} parent=5 // pred_region
        %s1908 = ssub.s32 %s9, 2
        // Predicated region
        $region85: #{residual_forward_nhwc.1} parent=83 // pred_check
          %p1909 = pneg %p106
        $region86: #{residual_forward_nhwc.1} parent=83 // pred_check_branch
          %1911 = sbr.rel (%p1909) target = $region88
        $region87: #{residual_forward_nhwc.1} parent=83 // pred_region
          %s1912 = sand.u32 %s91, 1
          %s1913 = sand.u32 %s91, 1
          %s1914 = smul.addr %s1913, 104
          %s1915 = scalar_lea.vmem [#allocation2], %s1914
        $region88: #{residual_forward_nhwc.1} parent=83 // pred_fallthru
          _
      $region84: #{residual_forward_nhwc.1} parent=5 // pred_fallthru
        _
    $region6: #{residual_forward_nhwc.1} parent=1 // loop_footer
      %s13 = sadd.s32 1, %s9
    $region7: #{residual_forward_nhwc.1} parent=1 // loop_footer_branch
      %8 = sbr.rel target = $region3
    $region8: #{residual_forward_nhwc.1} parent=1 // loop_exit
      _

</llo_original>
